<compile_context>
chip_gen: v5e
topology: v5e:2x2
jax: 0.10.0
libtpu: 0.0.40
codegen_flags: <defaults>
</compile_context>

<pallas_src>
import numpy as np
import jax
import jax.numpy as jnp
from jax.experimental import pallas as pl
from jax.experimental.pallas import tpu as pltpu


# ----------------------------------------------------------------------------
# One-time host-side prep (NOT on the per-call jit path)
# ----------------------------------------------------------------------------
def _build_im2col_index():
    # P1[i*N + n, j*36 + pos*9 + (di*3+dj)] = x[n, 0, 2i+a+di, 2j+b+dj], pos=2a+b
    idx = np.empty((13, 13, 4, 9), np.int32)
    for i in range(13):
        for j in range(13):
            for a in range(2):
                for b in range(2):
                    for di in range(3):
                        for dj in range(3):
                            idx[i, j, 2 * a + b, di * 3 + dj] = \
                                (2 * i + a + di) * 28 + (2 * j + b + dj)
    idx = idx.reshape(13, 468)
    # col 468 -> constant 1 (folded biases); cols 469..471 -> constant 0 (pad).
    return np.concatenate(
        [idx, np.full((13, 1), 784, np.int32), np.full((13, 3), 785, np.int32)],
        axis=1)                                                   # (13, 472)


def prepare_params(params, batch):
    """One-time repacking of the module parameters into MXU-friendly,
    128-lane-aligned operands (host-side numpy; never re-run per call)."""
    n = batch
    w1 = np.asarray(params["w1"], np.float32)        # (5, 1, 3, 3)
    b1 = np.asarray(params["b1"], np.float32)
    w2 = np.asarray(params["w2"], np.float32)        # (12, 5, 5, 5)
    b2 = np.asarray(params["b2"], np.float32)
    gamma = np.asarray(params["gamma"], np.float32)
    beta = np.asarray(params["beta"], np.float32)
    fc1_w = np.asarray(params["fc1_w"], np.float32)  # (100, 972)
    fc1_b = np.asarray(params["fc1_b"], np.float32)
    fc2_w = np.asarray(params["fc2_w"], np.float32)  # (10, 100)
    fc2_b = np.asarray(params["fc2_b"], np.float32)

    # conv1 weight: block-diagonal over (pool position, output column j); each
    # of the 4 pool-position groups is padded 65 -> 128 lanes.  Row 468 (the
    # constant-1 im2col column) carries the conv1 bias plus a 1.0 at lane
    # pos*128+65 so the pooled activations keep a constant-1 lane that is used
    # to fold the conv2 bias.  (The matrix is ~98% zeros; acceptable because
    # the kernel is latency-bound, not MXU-bound -- see perf review v5e item.)
    W1aug = np.zeros((472, 512), np.float32)
    for j in range(13):
        for pos in range(4):
            for di in range(3):
                for dj in range(3):
                    row = j * 36 + pos * 9 + di * 3 + dj
                    col = pos * 128 + j * 5
                    W1aug[row, col:col + 5] = w1[:, 0, di, dj]
    for pos in range(4):
        for j in range(13):
            W1aug[468, pos * 128 + j * 5: pos * 128 + j * 5 + 5] = b1
        W1aug[468, pos * 128 + 65] = 1.0

    # conv2 banded weight: row = q*5 + ci (pooled lane, q = oj + dj); 5 "di"
    # column groups, each padded 108 -> 128 lanes (column = di*128 + oj*12+co).
    # Row 65 (the constant-1 pooled lane) carries the conv2 bias in group di=0.
    M_all = np.zeros((128, 640), np.float32)
    for oj in range(9):
        for dj in range(5):
            q = oj + dj
            for di in range(5):
                for ci in range(5):
                    M_all[q * 5 + ci,
                          di * 128 + oj * 12: di * 128 + oj * 12 + 12] = w2[:, ci, di, dj]
        M_all[65, oj * 12: oj * 12 + 12] = b2

    # GroupNorm helpers.  conv2-output rows are ordered oi*N + n, so
    # B = kron(ones(9,9), I_N) sums the 9 oi-rows of each sample and broadcasts
    # back; Mstat does the per-group lane reduce+broadcast (|group| = 4*9*9).
    B = np.kron(np.ones((9, 9), np.float32), np.eye(n, dtype=np.float32))
    gpack = np.zeros((136, 128), np.float32)          # rows 0/1: gamma/beta tile
    gpack[0, :108] = np.tile(gamma, 9)                # lane = oj*12 + co
    gpack[1, :108] = np.tile(beta, 9)
    grp = (np.arange(108) % 12) // 4
    gpack[8:116, :108] = (grp[:, None] == grp[None, :]).astype(np.float32) / 324.0

    # fc1 weight with torch's channel-major flatten folded in: 9 (128,128)
    # blocks; block oi, row oj*12+co, col f  <-  fc1_w[f, co*81 + oi*9 + oj].
    W1fc = np.zeros((1152, 128), np.float32)
    for oi in range(9):
        for oj in range(9):
            for co in range(12):
                W1fc[oi * 128 + oj * 12 + co, :100] = fc1_w[:, co * 81 + oi * 9 + oj]

    # fc biases + fc2 weight packed into one operand (fewer input DMAs).
    fcpack = np.zeros((136, 128), np.float32)
    fcpack[0, :100] = fc1_b
    fcpack[1, :10] = fc2_b
    fcpack[8:108, :10] = fc2_w.T

    return {
        "idx": jnp.asarray(_build_im2col_index()),
        "W1aug": jnp.asarray(W1aug),
        "M_all": jnp.asarray(M_all),
        "B": jnp.asarray(B),
        "gpack": jnp.asarray(gpack),
        "W1fc": jnp.asarray(W1fc),
        "fcpack": jnp.asarray(fcpack),
    }


# ----------------------------------------------------------------------------
# Fused kernel: whole forward pass in one grid step, everything in VMEM.
# ----------------------------------------------------------------------------
def _make_fused_kernel(batch):
    n = batch

    def kernel(p1_ref, w1_ref, m2_ref, b_ref, gpack_ref, wfc_ref, fcp_ref, o_ref):
        # conv1 (+bias folded) + ReLU: one block-diagonal MXU matmul
        y1 = jnp.maximum(
            jnp.dot(p1_ref[...], w1_ref[...], preferred_element_type=jnp.float32),
            0.0)                                               # (13N, 512)

        # 2x2 max-pool: max of the four 128-aligned lane groups
        pooled = jnp.maximum(jnp.maximum(y1[:, 0:128], y1[:, 128:256]),
                             jnp.maximum(y1[:, 256:384], y1[:, 384:512]))

        # conv2 (+bias folded via constant pooled lane 65): banded matmul
        full = jnp.dot(pooled, m2_ref[...],
                       preferred_element_type=jnp.float32)     # (13N, 640)

        # finish conv2 with 5 batch-wide shifted slice-adds (rows = oi*N + n,
        # so each di is a single contiguous slice covering all samples; lane
        # groups are 128-aligned).
        z = full[0:9 * n, 0:128]
        for di in range(1, 5):
            z = z + full[di * n: di * n + 9 * n, di * 128:(di + 1) * 128]
        y = jnp.maximum(z, 0.0)                                # (9N, 128) relu(conv2)

        # GroupNorm(3, 12), batched over all samples via two matmuls per stat
        mstat = gpack_ref[8:136, :]
        mean = jnp.dot(jnp.dot(b_ref[...], y, preferred_element_type=jnp.float32),
                       mstat, preferred_element_type=jnp.float32)
        d = y - mean
        var = jnp.dot(jnp.dot(b_ref[...], d * d, preferred_element_type=jnp.float32),
                      mstat, preferred_element_type=jnp.float32)
        gn = d * jax.lax.rsqrt(var + 1e-5) * gpack_ref[0:1, :] + gpack_ref[1:2, :]

        # fc1: torch flatten folded into the contraction (9 accumulated matmuls)
        h = jnp.dot(gn[0:n, :], wfc_ref[0:128, :],
                    preferred_element_type=jnp.float32)
        for oi in range(1, 9):
            h = h + jnp.dot(gn[oi * n:(oi + 1) * n, :],
                            wfc_ref[oi * 128:(oi + 1) * 128, :],
                            preferred_element_type=jnp.float32)
        h = jnp.maximum(h + fcp_ref[0:1, :], 0.0)              # (N, 128), 100 valid

        # fc2 + log_softmax over dim=0 (batch axis)
        z2 = jnp.dot(h, fcp_ref[8:136, :],
                     preferred_element_type=jnp.float32) + fcp_ref[1:2, :]
        m = jnp.max(z2, axis=0, keepdims=True)
        lse = m + jnp.log(jnp.sum(jnp.exp(z2 - m), axis=0, keepdims=True))
        o_ref[...] = (z2 - lse)[:, 0:10]

    return kernel


def _fused_call(args, batch):
    in_specs = [pl.BlockSpec(a.shape, lambda i: (0, 0)) for a in args]
    return pl.pallas_call(
        _make_fused_kernel(batch),
        out_shape=jax.ShapeDtypeStruct((batch, 10), jnp.float32),
        grid=(1,),
        in_specs=in_specs,
        out_specs=pl.BlockSpec((batch, 10), lambda i: (0, 0)),
        compiler_params=pltpu.CompilerParams(
            dimension_semantics=("arbitrary",)),
    )(*args)


# ----------------------------------------------------------------------------
# Per-call forward: one tiny im2col gather, then the single fused pallas_call.
# ----------------------------------------------------------------------------
def forward(x, prep):
    n = x.shape[0]
    assert prep["B"].shape[0] == 9 * n, "prepared params were built for another batch"
    f32 = jnp.float32
    xf = jnp.concatenate(
        [x.reshape(n, 28 * 28).astype(f32),
         jnp.ones((n, 1), f32), jnp.zeros((n, 1), f32)], axis=1)   # (N, 786)
    p1 = xf[:, prep["idx"]]                                        # (N, 13, 472)
    p1 = jnp.swapaxes(p1, 0, 1).reshape(13 * n, 472)               # rows = i*N + n
    # TODO(synk): at larger batch, fuse this im2col into the kernel (raw x in,
    # rows built from VMEM slices) to avoid the ~7.8x HBM expansion (v5e/v6e
    # roofline), tile the batch axis on a "parallel" grid sized for v7x's
    # 64 MiB VMEM (2 TensorCores), and add a two-pass cross-tile reduction for
    # the dim=0 log_softmax; at batch=2 the whole working set (~2 MB) fits VMEM
    # in a single grid step.
    args = (p1, prep["W1aug"], prep["M_all"], prep["B"],
            prep["gpack"], prep["W1fc"], prep["fcpack"])
    return _fused_call(args, n)


# ----------------------------------------------------------------------------
# Pure-JAX reference (correctness check only; HIGHEST matmul precision)
# ----------------------------------------------------------------------------
def reference(x, params):
    hp = jax.lax.Precision.HIGHEST
    y = jax.lax.conv_general_dilated(
        x, params["w1"], (1, 1), "VALID",
        dimension_numbers=("NCHW", "OIHW", "NCHW"),
        precision=hp) + params["b1"][None, :, None, None]
    y = jnp.maximum(y, 0.0)
    y = jax.lax.reduce_window(y, -jnp.inf, jax.lax.max,
                              (1, 1, 2, 2), (1, 1, 2, 2), "VALID")
    y = jax.lax.conv_general_dilated(
        y, params["w2"], (1, 1), "VALID",
        dimension_numbers=("NCHW", "OIHW", "NCHW"),
        precision=hp) + params["b2"][None, :, None, None]
    y = jnp.maximum(y, 0.0)
    N = y.shape[0]
    yg = y.reshape(N, 3, 4 * 9 * 9)
    mean = yg.mean(axis=2, keepdims=True)
    var = yg.var(axis=2, keepdims=True)
    yg = (yg - mean) / jnp.sqrt(var + 1e-5)
    y = yg.reshape(N, 12, 9, 9) * params["gamma"][None, :, None, None] \
        + params["beta"][None, :, None, None]
    y = y.reshape(N, 972)
    h = jnp.maximum(jnp.dot(y, params["fc1_w"].T, precision=hp) + params["fc1_b"], 0.0)
    z = jnp.dot(h, params["fc2_w"].T, precision=hp) + params["fc2_b"]
    return jax.nn.log_softmax(z, axis=0)


def init_params(key):
    ks = jax.random.split(key, 8)
    return {
        "w1": jax.random.normal(ks[0], (5, 1, 3, 3), jnp.float32) * 0.1,
        "b1": jax.random.normal(ks[1], (5,), jnp.float32) * 0.1,
        "w2": jax.random.normal(ks[2], (12, 5, 5, 5), jnp.float32) * 0.05,
        "b2": jax.random.normal(ks[3], (12,), jnp.float32) * 0.05,
        "gamma": jnp.ones((12,), jnp.float32),   # torch GroupNorm default affine init
        "beta": jnp.zeros((12,), jnp.float32),
        "fc1_w": jax.random.normal(ks[4], (100, 972), jnp.float32) * 0.02,
        "fc1_b": jax.random.normal(ks[5], (100,), jnp.float32) * 0.02,
        "fc2_w": jax.random.normal(ks[6], (10, 100), jnp.float32) * 0.05,
        "fc2_b": jax.random.normal(ks[7], (10,), jnp.float32) * 0.05,
    }


if __name__ == "__main__":
    key = jax.random.PRNGKey(0)
    kx, kp = jax.random.split(key)
    params = init_params(kp)
    # batch=2, 1 channel, 28x28 spatial (required so that flatten gives 972 features)
    x = jax.random.normal(kx, (2, 1, 28, 28), jnp.float32)

    prep = prepare_params(params, batch=x.shape[0])   # one-time, off the jit path
    fwd = jax.jit(forward)
    out = jax.block_until_ready(fwd(x, prep))
    assert out.shape == (2, 10), out.shape

    ref = jax.block_until_ready(reference(x, params))
    max_err = float(jnp.max(jnp.abs(out - ref)))
    assert max_err < 1e-3, f"mismatch vs reference: {max_err}"

    print("KERNEL_OK")
</pallas_src>

<mosaic_0001>
module attributes {stable_mosaic.version = 11 : i64} {
  func.func @kernel(%arg0: i32, %arg1: memref<26x472xf32, #tpu.memory_space<vmem>>, %arg2: memref<472x512xf32, #tpu.memory_space<vmem>>, %arg3: memref<128x640xf32, #tpu.memory_space<vmem>>, %arg4: memref<18x18xf32, #tpu.memory_space<vmem>>, %arg5: memref<136x128xf32, #tpu.memory_space<vmem>>, %arg6: memref<1152x128xf32, #tpu.memory_space<vmem>>, %arg7: memref<136x128xf32, #tpu.memory_space<vmem>>, %arg8: memref<2x10xf32, #tpu.memory_space<vmem>>) attributes {dimension_semantics = [#tpu.dimension_semantics<arbitrary>], iteration_bounds = array<i64: 1>, scalar_prefetch = 0 : i64, scratch_operands = 0 : i64, tpu.core_type = #tpu.core_type<tc>, window_params = [{pipeline_mode = #tpu.pipeline_mode<synchronous>, transform_indices = @transform_0, window_bounds = array<i64: 26, 472>}, {pipeline_mode = #tpu.pipeline_mode<synchronous>, transform_indices = @transform_1, window_bounds = array<i64: 472, 512>}, {pipeline_mode = #tpu.pipeline_mode<synchronous>, transform_indices = @transform_2, window_bounds = array<i64: 128, 640>}, {pipeline_mode = #tpu.pipeline_mode<synchronous>, transform_indices = @transform_3, window_bounds = array<i64: 18, 18>}, {pipeline_mode = #tpu.pipeline_mode<synchronous>, transform_indices = @transform_4, window_bounds = array<i64: 136, 128>}, {pipeline_mode = #tpu.pipeline_mode<synchronous>, transform_indices = @transform_5, window_bounds = array<i64: 1152, 128>}, {pipeline_mode = #tpu.pipeline_mode<synchronous>, transform_indices = @transform_6, window_bounds = array<i64: 136, 128>}, {pipeline_mode = #tpu.pipeline_mode<synchronous>, transform_indices = @transform_7, window_bounds = array<i64: 2, 10>}]} {
    %c0 = arith.constant 0 : index
    %c0_0 = arith.constant 0 : index
    %0 = vector.load %arg1[%c0, %c0_0] : memref<26x472xf32, #tpu.memory_space<vmem>>, vector<26x472xf32>
    %c0_1 = arith.constant 0 : index
    %c0_2 = arith.constant 0 : index
    %1 = vector.load %arg2[%c0_1, %c0_2] : memref<472x512xf32, #tpu.memory_space<vmem>>, vector<472x512xf32>
    %cst = arith.constant dense<0.000000e+00> : vector<26x512xf32>
    %2 = tpu.matmul %0, %1, %cst {dimension_numbers = #tpu.dot_dimension_numbers<[1], [0], [0], [1], [0, 0, 1, 1], [], []>} : vector<26x472xf32>, vector<472x512xf32>, vector<26x512xf32> -> vector<26x512xf32>
    %cst_3 = arith.constant 0.000000e+00 : f32
    %3 = vector.broadcast %cst_3 : f32 to vector<26x512xf32>
    %4 = arith.maximumf %2, %3 : vector<26x512xf32>
    %5 = vector.extract_strided_slice %4 {offsets = [0, 0], sizes = [26, 128], strides = [1, 1]} : vector<26x512xf32> to vector<26x128xf32>
    %6 = vector.extract_strided_slice %4 {offsets = [0, 128], sizes = [26, 128], strides = [1, 1]} : vector<26x512xf32> to vector<26x128xf32>
    %7 = arith.maximumf %5, %6 : vector<26x128xf32>
    %8 = vector.extract_strided_slice %4 {offsets = [0, 256], sizes = [26, 128], strides = [1, 1]} : vector<26x512xf32> to vector<26x128xf32>
    %9 = vector.extract_strided_slice %4 {offsets = [0, 384], sizes = [26, 128], strides = [1, 1]} : vector<26x512xf32> to vector<26x128xf32>
    %10 = arith.maximumf %8, %9 : vector<26x128xf32>
    %11 = arith.maximumf %7, %10 : vector<26x128xf32>
    %c0_4 = arith.constant 0 : index
    %c0_5 = arith.constant 0 : index
    %12 = vector.load %arg3[%c0_4, %c0_5] : memref<128x640xf32, #tpu.memory_space<vmem>>, vector<128x640xf32>
    %cst_6 = arith.constant dense<0.000000e+00> : vector<26x640xf32>
    %13 = tpu.matmul %11, %12, %cst_6 {dimension_numbers = #tpu.dot_dimension_numbers<[1], [0], [0], [1], [0, 0, 1, 1], [], []>} : vector<26x128xf32>, vector<128x640xf32>, vector<26x640xf32> -> vector<26x640xf32>
    %14 = vector.extract_strided_slice %13 {offsets = [0, 0], sizes = [18, 128], strides = [1, 1]} : vector<26x640xf32> to vector<18x128xf32>
    %15 = vector.extract_strided_slice %13 {offsets = [2, 128], sizes = [18, 128], strides = [1, 1]} : vector<26x640xf32> to vector<18x128xf32>
    %16 = arith.addf %14, %15 : vector<18x128xf32>
    %17 = vector.extract_strided_slice %13 {offsets = [4, 256], sizes = [18, 128], strides = [1, 1]} : vector<26x640xf32> to vector<18x128xf32>
    %18 = arith.addf %16, %17 : vector<18x128xf32>
    %19 = vector.extract_strided_slice %13 {offsets = [6, 384], sizes = [18, 128], strides = [1, 1]} : vector<26x640xf32> to vector<18x128xf32>
    %20 = arith.addf %18, %19 : vector<18x128xf32>
    %21 = vector.extract_strided_slice %13 {offsets = [8, 512], sizes = [18, 128], strides = [1, 1]} : vector<26x640xf32> to vector<18x128xf32>
    %22 = arith.addf %20, %21 : vector<18x128xf32>
    %cst_7 = arith.constant 0.000000e+00 : f32
    %23 = vector.broadcast %cst_7 : f32 to vector<18x128xf32>
    %24 = arith.maximumf %22, %23 : vector<18x128xf32>
    %c8 = arith.constant 8 : index
    %c0_8 = arith.constant 0 : index
    %25 = vector.load %arg5[%c8, %c0_8] : memref<136x128xf32, #tpu.memory_space<vmem>>, vector<128x128xf32>
    %c0_9 = arith.constant 0 : index
    %c0_10 = arith.constant 0 : index
    %26 = vector.load %arg4[%c0_9, %c0_10] : memref<18x18xf32, #tpu.memory_space<vmem>>, vector<18x18xf32>
    %cst_11 = arith.constant dense<0.000000e+00> : vector<18x128xf32>
    %27 = tpu.matmul %26, %24, %cst_11 {dimension_numbers = #tpu.dot_dimension_numbers<[1], [0], [0], [1], [0, 0, 1, 1], [], []>} : vector<18x18xf32>, vector<18x128xf32>, vector<18x128xf32> -> vector<18x128xf32>
    %cst_12 = arith.constant dense<0.000000e+00> : vector<18x128xf32>
    %28 = tpu.matmul %27, %25, %cst_12 {dimension_numbers = #tpu.dot_dimension_numbers<[1], [0], [0], [1], [0, 0, 1, 1], [], []>} : vector<18x128xf32>, vector<128x128xf32>, vector<18x128xf32> -> vector<18x128xf32>
    %29 = arith.subf %24, %28 : vector<18x128xf32>
    %c0_13 = arith.constant 0 : index
    %c0_14 = arith.constant 0 : index
    %30 = vector.load %arg4[%c0_13, %c0_14] : memref<18x18xf32, #tpu.memory_space<vmem>>, vector<18x18xf32>
    %31 = arith.mulf %29, %29 : vector<18x128xf32>
    %cst_15 = arith.constant dense<0.000000e+00> : vector<18x128xf32>
    %32 = tpu.matmul %30, %31, %cst_15 {dimension_numbers = #tpu.dot_dimension_numbers<[1], [0], [0], [1], [0, 0, 1, 1], [], []>} : vector<18x18xf32>, vector<18x128xf32>, vector<18x128xf32> -> vector<18x128xf32>
    %cst_16 = arith.constant dense<0.000000e+00> : vector<18x128xf32>
    %33 = tpu.matmul %32, %25, %cst_16 {dimension_numbers = #tpu.dot_dimension_numbers<[1], [0], [0], [1], [0, 0, 1, 1], [], []>} : vector<18x128xf32>, vector<128x128xf32>, vector<18x128xf32> -> vector<18x128xf32>
    %cst_17 = arith.constant 9.99999974E-6 : f32
    %34 = vector.broadcast %cst_17 : f32 to vector<18x128xf32>
    %35 = arith.addf %33, %34 : vector<18x128xf32>
    %36 = math.rsqrt %35 : vector<18x128xf32>
    %37 = arith.mulf %29, %36 : vector<18x128xf32>
    %c0_18 = arith.constant 0 : index
    %c0_19 = arith.constant 0 : index
    %38 = vector.load %arg5[%c0_18, %c0_19] : memref<136x128xf32, #tpu.memory_space<vmem>>, vector<1x128xf32>
    %39 = vector.broadcast %38 : vector<1x128xf32> to vector<18x128xf32>
    %40 = arith.mulf %37, %39 : vector<18x128xf32>
    %c1 = arith.constant 1 : index
    %c0_20 = arith.constant 0 : index
    %41 = vector.load %arg5[%c1, %c0_20] : memref<136x128xf32, #tpu.memory_space<vmem>>, vector<1x128xf32>
    %42 = vector.broadcast %41 : vector<1x128xf32> to vector<18x128xf32>
    %43 = arith.addf %40, %42 : vector<18x128xf32>
    %44 = vector.extract_strided_slice %43 {offsets = [0, 0], sizes = [2, 128], strides = [1, 1]} : vector<18x128xf32> to vector<2x128xf32>
    %c0_21 = arith.constant 0 : index
    %c0_22 = arith.constant 0 : index
    %45 = vector.load %arg6[%c0_21, %c0_22] : memref<1152x128xf32, #tpu.memory_space<vmem>>, vector<128x128xf32>
    %cst_23 = arith.constant dense<0.000000e+00> : vector<2x128xf32>
    %46 = tpu.matmul %44, %45, %cst_23 {dimension_numbers = #tpu.dot_dimension_numbers<[1], [0], [0], [1], [0, 0, 1, 1], [], []>} : vector<2x128xf32>, vector<128x128xf32>, vector<2x128xf32> -> vector<2x128xf32>
    %47 = vector.extract_strided_slice %43 {offsets = [2, 0], sizes = [2, 128], strides = [1, 1]} : vector<18x128xf32> to vector<2x128xf32>
    %c128 = arith.constant 128 : index
    %c0_24 = arith.constant 0 : index
    %48 = vector.load %arg6[%c128, %c0_24] : memref<1152x128xf32, #tpu.memory_space<vmem>>, vector<128x128xf32>
    %cst_25 = arith.constant dense<0.000000e+00> : vector<2x128xf32>
    %49 = tpu.matmul %47, %48, %cst_25 {dimension_numbers = #tpu.dot_dimension_numbers<[1], [0], [0], [1], [0, 0, 1, 1], [], []>} : vector<2x128xf32>, vector<128x128xf32>, vector<2x128xf32> -> vector<2x128xf32>
    %50 = arith.addf %46, %49 : vector<2x128xf32>
    %51 = vector.extract_strided_slice %43 {offsets = [4, 0], sizes = [2, 128], strides = [1, 1]} : vector<18x128xf32> to vector<2x128xf32>
    %c256 = arith.constant 256 : index
    %c0_26 = arith.constant 0 : index
    %52 = vector.load %arg6[%c256, %c0_26] : memref<1152x128xf32, #tpu.memory_space<vmem>>, vector<128x128xf32>
    %cst_27 = arith.constant dense<0.000000e+00> : vector<2x128xf32>
    %53 = tpu.matmul %51, %52, %cst_27 {dimension_numbers = #tpu.dot_dimension_numbers<[1], [0], [0], [1], [0, 0, 1, 1], [], []>} : vector<2x128xf32>, vector<128x128xf32>, vector<2x128xf32> -> vector<2x128xf32>
    %54 = arith.addf %50, %53 : vector<2x128xf32>
    %55 = vector.extract_strided_slice %43 {offsets = [6, 0], sizes = [2, 128], strides = [1, 1]} : vector<18x128xf32> to vector<2x128xf32>
    %c384 = arith.constant 384 : index
    %c0_28 = arith.constant 0 : index
    %56 = vector.load %arg6[%c384, %c0_28] : memref<1152x128xf32, #tpu.memory_space<vmem>>, vector<128x128xf32>
    %cst_29 = arith.constant dense<0.000000e+00> : vector<2x128xf32>
    %57 = tpu.matmul %55, %56, %cst_29 {dimension_numbers = #tpu.dot_dimension_numbers<[1], [0], [0], [1], [0, 0, 1, 1], [], []>} : vector<2x128xf32>, vector<128x128xf32>, vector<2x128xf32> -> vector<2x128xf32>
    %58 = arith.addf %54, %57 : vector<2x128xf32>
    %59 = vector.extract_strided_slice %43 {offsets = [8, 0], sizes = [2, 128], strides = [1, 1]} : vector<18x128xf32> to vector<2x128xf32>
    %c512 = arith.constant 512 : index
    %c0_30 = arith.constant 0 : index
    %60 = vector.load %arg6[%c512, %c0_30] : memref<1152x128xf32, #tpu.memory_space<vmem>>, vector<128x128xf32>
    %cst_31 = arith.constant dense<0.000000e+00> : vector<2x128xf32>
    %61 = tpu.matmul %59, %60, %cst_31 {dimension_numbers = #tpu.dot_dimension_numbers<[1], [0], [0], [1], [0, 0, 1, 1], [], []>} : vector<2x128xf32>, vector<128x128xf32>, vector<2x128xf32> -> vector<2x128xf32>
    %62 = arith.addf %58, %61 : vector<2x128xf32>
    %63 = vector.extract_strided_slice %43 {offsets = [10, 0], sizes = [2, 128], strides = [1, 1]} : vector<18x128xf32> to vector<2x128xf32>
    %c640 = arith.constant 640 : index
    %c0_32 = arith.constant 0 : index
    %64 = vector.load %arg6[%c640, %c0_32] : memref<1152x128xf32, #tpu.memory_space<vmem>>, vector<128x128xf32>
    %cst_33 = arith.constant dense<0.000000e+00> : vector<2x128xf32>
    %65 = tpu.matmul %63, %64, %cst_33 {dimension_numbers = #tpu.dot_dimension_numbers<[1], [0], [0], [1], [0, 0, 1, 1], [], []>} : vector<2x128xf32>, vector<128x128xf32>, vector<2x128xf32> -> vector<2x128xf32>
    %66 = arith.addf %62, %65 : vector<2x128xf32>
    %67 = vector.extract_strided_slice %43 {offsets = [12, 0], sizes = [2, 128], strides = [1, 1]} : vector<18x128xf32> to vector<2x128xf32>
    %c768 = arith.constant 768 : index
    %c0_34 = arith.constant 0 : index
    %68 = vector.load %arg6[%c768, %c0_34] : memref<1152x128xf32, #tpu.memory_space<vmem>>, vector<128x128xf32>
    %cst_35 = arith.constant dense<0.000000e+00> : vector<2x128xf32>
    %69 = tpu.matmul %67, %68, %cst_35 {dimension_numbers = #tpu.dot_dimension_numbers<[1], [0], [0], [1], [0, 0, 1, 1], [], []>} : vector<2x128xf32>, vector<128x128xf32>, vector<2x128xf32> -> vector<2x128xf32>
    %70 = arith.addf %66, %69 : vector<2x128xf32>
    %71 = vector.extract_strided_slice %43 {offsets = [14, 0], sizes = [2, 128], strides = [1, 1]} : vector<18x128xf32> to vector<2x128xf32>
    %c896 = arith.constant 896 : index
    %c0_36 = arith.constant 0 : index
    %72 = vector.load %arg6[%c896, %c0_36] : memref<1152x128xf32, #tpu.memory_space<vmem>>, vector<128x128xf32>
    %cst_37 = arith.constant dense<0.000000e+00> : vector<2x128xf32>
    %73 = tpu.matmul %71, %72, %cst_37 {dimension_numbers = #tpu.dot_dimension_numbers<[1], [0], [0], [1], [0, 0, 1, 1], [], []>} : vector<2x128xf32>, vector<128x128xf32>, vector<2x128xf32> -> vector<2x128xf32>
    %74 = arith.addf %70, %73 : vector<2x128xf32>
    %75 = vector.extract_strided_slice %43 {offsets = [16, 0], sizes = [2, 128], strides = [1, 1]} : vector<18x128xf32> to vector<2x128xf32>
    %c1024 = arith.constant 1024 : index
    %c0_38 = arith.constant 0 : index
    %76 = vector.load %arg6[%c1024, %c0_38] : memref<1152x128xf32, #tpu.memory_space<vmem>>, vector<128x128xf32>
    %cst_39 = arith.constant dense<0.000000e+00> : vector<2x128xf32>
    %77 = tpu.matmul %75, %76, %cst_39 {dimension_numbers = #tpu.dot_dimension_numbers<[1], [0], [0], [1], [0, 0, 1, 1], [], []>} : vector<2x128xf32>, vector<128x128xf32>, vector<2x128xf32> -> vector<2x128xf32>
    %78 = arith.addf %74, %77 : vector<2x128xf32>
    %c0_40 = arith.constant 0 : index
    %c0_41 = arith.constant 0 : index
    %79 = vector.load %arg7[%c0_40, %c0_41] : memref<136x128xf32, #tpu.memory_space<vmem>>, vector<1x128xf32>
    %80 = vector.broadcast %79 : vector<1x128xf32> to vector<2x128xf32>
    %81 = arith.addf %78, %80 : vector<2x128xf32>
    %cst_42 = arith.constant 0.000000e+00 : f32
    %82 = vector.broadcast %cst_42 : f32 to vector<2x128xf32>
    %83 = arith.maximumf %81, %82 : vector<2x128xf32>
    %c8_43 = arith.constant 8 : index
    %c0_44 = arith.constant 0 : index
    %84 = vector.load %arg7[%c8_43, %c0_44] : memref<136x128xf32, #tpu.memory_space<vmem>>, vector<128x128xf32>
    %cst_45 = arith.constant dense<0.000000e+00> : vector<2x128xf32>
    %85 = tpu.matmul %83, %84, %cst_45 {dimension_numbers = #tpu.dot_dimension_numbers<[1], [0], [0], [1], [0, 0, 1, 1], [], []>} : vector<2x128xf32>, vector<128x128xf32>, vector<2x128xf32> -> vector<2x128xf32>
    %c1_46 = arith.constant 1 : index
    %c0_47 = arith.constant 0 : index
    %86 = vector.load %arg7[%c1_46, %c0_47] : memref<136x128xf32, #tpu.memory_space<vmem>>, vector<1x128xf32>
    %87 = vector.broadcast %86 : vector<1x128xf32> to vector<2x128xf32>
    %88 = arith.addf %85, %87 : vector<2x128xf32>
    %cst_48 = arith.constant dense<0xFF800000> : vector<128xf32>
    %89 = vector.multi_reduction <maximumf>, %88, %cst_48 [0] : vector<2x128xf32> to vector<128xf32>
    %90 = vector.shape_cast %89 : vector<128xf32> to vector<1x128xf32>
    %91 = vector.broadcast %90 : vector<1x128xf32> to vector<2x128xf32>
    %92 = arith.subf %88, %91 : vector<2x128xf32>
    %93 = math.exp %92 : vector<2x128xf32>
    %cst_49 = arith.constant dense<0.000000e+00> : vector<128xf32>
    %94 = vector.multi_reduction <add>, %93, %cst_49 [0] : vector<2x128xf32> to vector<128xf32>
    %95 = vector.shape_cast %94 : vector<128xf32> to vector<1x128xf32>
    %96 = math.log %95 : vector<1x128xf32>
    %97 = arith.addf %90, %96 : vector<1x128xf32>
    %98 = vector.broadcast %97 : vector<1x128xf32> to vector<2x128xf32>
    %99 = arith.subf %88, %98 : vector<2x128xf32>
    %100 = vector.extract_strided_slice %99 {offsets = [0, 0], sizes = [2, 10], strides = [1, 1]} : vector<2x128xf32> to vector<2x10xf32>
    %c0_50 = arith.constant 0 : index
    %c0_51 = arith.constant 0 : index
    %101 = vector.load %arg8[%c0_50, %c0_51] : memref<2x10xf32, #tpu.memory_space<vmem>>, vector<2x10xf32>
    tpu.vector_store %arg8[%c0_50, %c0_51], %100 {strides = array<i32>} : memref<2x10xf32, #tpu.memory_space<vmem>>, vector<2x10xf32>,
    return
  }
  func.func @transform_0(%arg0: i32) -> (i32, i32) {
    %c0_i32 = arith.constant 0 : i32
    %c0_i32_0 = arith.constant 0 : i32
    %c0_i32_1 = arith.constant 0 : i32
    return %c0_i32, %c0_i32_0 : i32, i32
  }
  func.func @transform_1(%arg0: i32) -> (i32, i32) {
    %c0_i32 = arith.constant 0 : i32
    %c0_i32_0 = arith.constant 0 : i32
    %c0_i32_1 = arith.constant 0 : i32
    return %c0_i32, %c0_i32_0 : i32, i32
  }
  func.func @transform_2(%arg0: i32) -> (i32, i32) {
    %c0_i32 = arith.constant 0 : i32
    %c0_i32_0 = arith.constant 0 : i32
    %c0_i32_1 = arith.constant 0 : i32
    return %c0_i32, %c0_i32_0 : i32, i32
  }
  func.func @transform_3(%arg0: i32) -> (i32, i32) {
    %c0_i32 = arith.constant 0 : i32
    %c0_i32_0 = arith.constant 0 : i32
    %c0_i32_1 = arith.constant 0 : i32
    return %c0_i32, %c0_i32_0 : i32, i32
  }
  func.func @transform_4(%arg0: i32) -> (i32, i32) {
    %c0_i32 = arith.constant 0 : i32
    %c0_i32_0 = arith.constant 0 : i32
    %c0_i32_1 = arith.constant 0 : i32
    return %c0_i32, %c0_i32_0 : i32, i32
  }
  func.func @transform_5(%arg0: i32) -> (i32, i32) {
    %c0_i32 = arith.constant 0 : i32
    %c0_i32_0 = arith.constant 0 : i32
    %c0_i32_1 = arith.constant 0 : i32
    return %c0_i32, %c0_i32_0 : i32, i32
  }
  func.func @transform_6(%arg0: i32) -> (i32, i32) {
    %c0_i32 = arith.constant 0 : i32
    %c0_i32_0 = arith.constant 0 : i32
    %c0_i32_1 = arith.constant 0 : i32
    return %c0_i32, %c0_i32_0 : i32, i32
  }
  func.func @transform_7(%arg0: i32) -> (i32, i32) {
    %c0_i32 = arith.constant 0 : i32
    %c0_i32_0 = arith.constant 0 : i32
    %c0_i32_1 = arith.constant 0 : i32
    return %c0_i32, %c0_i32_0 : i32, i32
  }
}

</mosaic_0001>

<llo_original>
// kernel: forward.1
$region0: #{forward.1}
  #allocation0 [shape = 'u32[]', space=smem, size = 0x4, offset = 0x4, fixed_abs, tag = 'smem constant byte address 0x4 - core index']
  #allocation1 [shape = 'u32[72,128]{1,0:T(1,128)}', space=vmem, size = 0x9000, scoped, tag = 'internal scratch']
  %s0 = inlined_call_operand.vmem [shape: f32[26,472], index: 0, kind: input, shape index: {}]
  %s1 = inlined_call_operand.vmem [shape: f32[472,512], index: 1, kind: input, shape index: {}]
  %s2 = inlined_call_operand.vmem [shape: f32[128,640], index: 2, kind: input, shape index: {}]
  %s3 = inlined_call_operand.vmem [shape: f32[18,18], index: 3, kind: input, shape index: {}]
  %s4 = inlined_call_operand.vmem [shape: f32[136,128], index: 4, kind: input, shape index: {}]
  %s5 = inlined_call_operand.vmem [shape: f32[1152,128], index: 5, kind: input, shape index: {}]
  %s6 = inlined_call_operand.vmem [shape: f32[136,128], index: 6, kind: input, shape index: {}]
  %s7 = inlined_call_operand.hbm [shape: f32[2,10], index: 7, kind: output, shape index: {}]
  %s8 = sld [smem:[#allocation0]]
  $region38: #{forward.1} parent=0
    _
  %s10 = ssub.s32 1, %s8
  %s11 = scalar_select 0, %s10, %s8
  $region1: #{forward.1} parent=0
    #allocation2 [shape = 'u8[1024]{0}', space=vmem, size = 0x400, scoped, tag = 'output window, operand 0, single buffered']
    #allocation3 [shape = 's32[1]{0}', space=sflag, size = 0x4, scoped, tag = 'scoped memory for forward.1']
    %12 = vsyncpa [#allocation3], 0
    // Predicated region
    $region2: #{forward.1} parent=1 // pred_check
      _
    $region3: #{forward.1} parent=1 // pred_check_branch
      %14 = sbr.rel (0) target = $region5
    $region4: #{forward.1} parent=1 // pred_region
      _
    $region5: #{forward.1} parent=1 // pred_fallthru
      _
    // Predicated region
    $region6: #{forward.1} parent=1 // pred_check
      _
    $region7: #{forward.1} parent=1 // pred_check_branch
      %16 = sbr.rel (0) target = $region9
    $region8: #{forward.1} parent=1 // pred_region
      _
    $region9: #{forward.1} parent=1 // pred_fallthru
      _
    // Predicated region
    $region10: #{forward.1} parent=1 // pred_check
      _
    $region11: #{forward.1} parent=1 // pred_check_branch
      %18 = sbr.rel (0) target = $region13
    $region12: #{forward.1} parent=1 // pred_region
      _
    $region13: #{forward.1} parent=1 // pred_fallthru
      _
    // Predicated region
    $region14: #{forward.1} parent=1 // pred_check
      _
    $region15: #{forward.1} parent=1 // pred_check_branch
      %20 = sbr.rel (0) target = $region17
    $region16: #{forward.1} parent=1 // pred_region
      _
    $region17: #{forward.1} parent=1 // pred_fallthru
      _
    // Predicated region
    $region18: #{forward.1} parent=1 // pred_check
      _
    $region19: #{forward.1} parent=1 // pred_check_branch
      %22 = sbr.rel (0) target = $region21
    $region20: #{forward.1} parent=1 // pred_region
      _
    $region21: #{forward.1} parent=1 // pred_fallthru
      _
    // Predicated region
    $region22: #{forward.1} parent=1 // pred_check
      _
    $region23: #{forward.1} parent=1 // pred_check_branch
      %24 = sbr.rel (0) target = $region25
    $region24: #{forward.1} parent=1 // pred_region
      _
    $region25: #{forward.1} parent=1 // pred_fallthru
      _
    // Predicated region
    $region26: #{forward.1} parent=1 // pred_check
      _
    $region27: #{forward.1} parent=1 // pred_check_branch
      %26 = sbr.rel (0) target = $region29
    $region28: #{forward.1} parent=1 // pred_region
      _
    $region29: #{forward.1} parent=1 // pred_fallthru
      _
    %v27 = vld [vmem:[%s0] sm:$0xff]
    %v28 = vld [vmem:[%s0 + $0x8] sm:$0xff]
    %v29 = vld [vmem:[%s0 + $0x10] sm:$0xff]
    %v30 = vld [vmem:[%s0 + $0x18] sm:$0xff]
    %v31 = vld [vmem:[%s0 + $0x20] sm:$0xff]
    %v32 = vld [vmem:[%s0 + $0x28] sm:$0xff]
    %v33 = vld [vmem:[%s0 + $0x30] sm:$0xff]
    %v34 = vld [vmem:[%s0 + $0x38] sm:$0xff]
    %v35 = vld [vmem:[%s0 + $0x40] sm:$0xff]
    %v36 = vld [vmem:[%s0 + $0x48] sm:$0xff]
    %v37 = vld [vmem:[%s0 + $0x50] sm:$0xff]
    %v38 = vld [vmem:[%s0 + $0x58] sm:$0xff]
    %v39 = vld [vmem:[%s0 + $0x60] sm:$0x3]
    %v40 = vld [vmem:[%s0 + $0x68] sm:$0x3]
    %v41 = vld [vmem:[%s0 + $0x70] sm:$0x3]
    %v42 = vld [vmem:[%s0 + $0x78] sm:$0x3]
    %v43 = vld [vmem:[%s1] sm:$0xff]
    %v44 = vld [vmem:[%s1 + $0x8] sm:$0xff]
    %v45 = vld [vmem:[%s1 + $0x10] sm:$0xff]
    %v46 = vld [vmem:[%s1 + $0x18] sm:$0xff]
    %v47 = vld [vmem:[%s1 + $0x20] sm:$0xff]
    %v48 = vld [vmem:[%s1 + $0x28] sm:$0xff]
    %v49 = vld [vmem:[%s1 + $0x30] sm:$0xff]
    %v50 = vld [vmem:[%s1 + $0x38] sm:$0xff]
    %v51 = vld [vmem:[%s1 + $0x40] sm:$0xff]
    %v52 = vld [vmem:[%s1 + $0x48] sm:$0xff]
    %v53 = vld [vmem:[%s1 + $0x50] sm:$0xff]
    %v54 = vld [vmem:[%s1 + $0x58] sm:$0xff]
    %v55 = vld [vmem:[%s1 + $0x60] sm:$0xff]
    %v56 = vld [vmem:[%s1 + $0x68] sm:$0xff]
    %v57 = vld [vmem:[%s1 + $0x70] sm:$0xff]
    %v58 = vld [vmem:[%s1 + $0x78] sm:$0xff]
    %v59 = vld [vmem:[%s1 + $0x80] sm:$0xff]
    %v60 = vld [vmem:[%s1 + $0x88] sm:$0xff]
    %v61 = vld [vmem:[%s1 + $0x90] sm:$0xff]
    %v62 = vld [vmem:[%s1 + $0x98] sm:$0xff]
    %v63 = vld [vmem:[%s1 + $0xa0] sm:$0xff]
    %v64 = vld [vmem:[%s1 + $0xa8] sm:$0xff]
    %v65 = vld [vmem:[%s1 + $0xb0] sm:$0xff]
    %v66 = vld [vmem:[%s1 + $0xb8] sm:$0xff]
    %v67 = vld [vmem:[%s1 + $0xc0] sm:$0xff]
    %v68 = vld [vmem:[%s1 + $0xc8] sm:$0xff]
    %v69 = vld [vmem:[%s1 + $0xd0] sm:$0xff]
    %v70 = vld [vmem:[%s1 + $0xd8] sm:$0xff]
    %v71 = vld [vmem:[%s1 + $0xe0] sm:$0xff]
    %v72 = vld [vmem:[%s1 + $0xe8] sm:$0xff]
    %v73 = vld [vmem:[%s1 + $0xf0] sm:$0xff]
    %v74 = vld [vmem:[%s1 + $0xf8] sm:$0xff]
    %v75 = vld [vmem:[%s1 + $0x100] sm:$0xff]
    %v76 = vld [vmem:[%s1 + $0x108] sm:$0xff]
    %v77 = vld [vmem:[%s1 + $0x110] sm:$0xff]
    %v78 = vld [vmem:[%s1 + $0x118] sm:$0xff]
    %v79 = vld [vmem:[%s1 + $0x120] sm:$0xff]
    %v80 = vld [vmem:[%s1 + $0x128] sm:$0xff]
    %v81 = vld [vmem:[%s1 + $0x130] sm:$0xff]
    %v82 = vld [vmem:[%s1 + $0x138] sm:$0xff]
    %v83 = vld [vmem:[%s1 + $0x140] sm:$0xff]
    %v84 = vld [vmem:[%s1 + $0x148] sm:$0xff]
    %v85 = vld [vmem:[%s1 + $0x150] sm:$0xff]
    %v86 = vld [vmem:[%s1 + $0x158] sm:$0xff]
    %v87 = vld [vmem:[%s1 + $0x160] sm:$0xff]
    %v88 = vld [vmem:[%s1 + $0x168] sm:$0xff]
    %v89 = vld [vmem:[%s1 + $0x170] sm:$0xff]
    %v90 = vld [vmem:[%s1 + $0x178] sm:$0xff]
    %v91 = vld [vmem:[%s1 + $0x180] sm:$0xff]
    %v92 = vld [vmem:[%s1 + $0x188] sm:$0xff]
    %v93 = vld [vmem:[%s1 + $0x190] sm:$0xff]
    %v94 = vld [vmem:[%s1 + $0x198] sm:$0xff]
    %v95 = vld [vmem:[%s1 + $0x1a0] sm:$0xff]
    %v96 = vld [vmem:[%s1 + $0x1a8] sm:$0xff]
    %v97 = vld [vmem:[%s1 + $0x1b0] sm:$0xff]
    %v98 = vld [vmem:[%s1 + $0x1b8] sm:$0xff]
    %v99 = vld [vmem:[%s1 + $0x1c0] sm:$0xff]
    %v100 = vld [vmem:[%s1 + $0x1c8] sm:$0xff]
    %v101 = vld [vmem:[%s1 + $0x1d0] sm:$0xff]
    %v102 = vld [vmem:[%s1 + $0x1d8] sm:$0xff]
    %v103 = vld [vmem:[%s1 + $0x1e0] sm:$0xff]
    %v104 = vld [vmem:[%s1 + $0x1e8] sm:$0xff]
    %v105 = vld [vmem:[%s1 + $0x1f0] sm:$0xff]
    %v106 = vld [vmem:[%s1 + $0x1f8] sm:$0xff]
    %v107 = vld [vmem:[%s1 + $0x200] sm:$0xff]
    %v108 = vld [vmem:[%s1 + $0x208] sm:$0xff]
    %v109 = vld [vmem:[%s1 + $0x210] sm:$0xff]
    %v110 = vld [vmem:[%s1 + $0x218] sm:$0xff]
    %v111 = vld [vmem:[%s1 + $0x220] sm:$0xff]
    %v112 = vld [vmem:[%s1 + $0x228] sm:$0xff]
    %v113 = vld [vmem:[%s1 + $0x230] sm:$0xff]
    %v114 = vld [vmem:[%s1 + $0x238] sm:$0xff]
    %v115 = vld [vmem:[%s1 + $0x240] sm:$0xff]
    %v116 = vld [vmem:[%s1 + $0x248] sm:$0xff]
    %v117 = vld [vmem:[%s1 + $0x250] sm:$0xff]
    %v118 = vld [vmem:[%s1 + $0x258] sm:$0xff]
    %v119 = vld [vmem:[%s1 + $0x260] sm:$0xff]
    %v120 = vld [vmem:[%s1 + $0x268] sm:$0xff]
    %v121 = vld [vmem:[%s1 + $0x270] sm:$0xff]
    %v122 = vld [vmem:[%s1 + $0x278] sm:$0xff]
    %v123 = vld [vmem:[%s1 + $0x280] sm:$0xff]
    %v124 = vld [vmem:[%s1 + $0x288] sm:$0xff]
    %v125 = vld [vmem:[%s1 + $0x290] sm:$0xff]
    %v126 = vld [vmem:[%s1 + $0x298] sm:$0xff]
    %v127 = vld [vmem:[%s1 + $0x2a0] sm:$0xff]
    %v128 = vld [vmem:[%s1 + $0x2a8] sm:$0xff]
    %v129 = vld [vmem:[%s1 + $0x2b0] sm:$0xff]
    %v130 = vld [vmem:[%s1 + $0x2b8] sm:$0xff]
    %v131 = vld [vmem:[%s1 + $0x2c0] sm:$0xff]
    %v132 = vld [vmem:[%s1 + $0x2c8] sm:$0xff]
    %v133 = vld [vmem:[%s1 + $0x2d0] sm:$0xff]
    %v134 = vld [vmem:[%s1 + $0x2d8] sm:$0xff]
    %v135 = vld [vmem:[%s1 + $0x2e0] sm:$0xff]
    %v136 = vld [vmem:[%s1 + $0x2e8] sm:$0xff]
    %v137 = vld [vmem:[%s1 + $0x2f0] sm:$0xff]
    %v138 = vld [vmem:[%s1 + $0x2f8] sm:$0xff]
    %v139 = vld [vmem:[%s1 + $0x300] sm:$0xff]
    %v140 = vld [vmem:[%s1 + $0x308] sm:$0xff]
    %v141 = vld [vmem:[%s1 + $0x310] sm:$0xff]
    %v142 = vld [vmem:[%s1 + $0x318] sm:$0xff]
    %v143 = vld [vmem:[%s1 + $0x320] sm:$0xff]
    %v144 = vld [vmem:[%s1 + $0x328] sm:$0xff]
    %v145 = vld [vmem:[%s1 + $0x330] sm:$0xff]
    %v146 = vld [vmem:[%s1 + $0x338] sm:$0xff]
    %v147 = vld [vmem:[%s1 + $0x340] sm:$0xff]
    %v148 = vld [vmem:[%s1 + $0x348] sm:$0xff]
    %v149 = vld [vmem:[%s1 + $0x350] sm:$0xff]
    %v150 = vld [vmem:[%s1 + $0x358] sm:$0xff]
    %v151 = vld [vmem:[%s1 + $0x360] sm:$0xff]
    %v152 = vld [vmem:[%s1 + $0x368] sm:$0xff]
    %v153 = vld [vmem:[%s1 + $0x370] sm:$0xff]
    %v154 = vld [vmem:[%s1 + $0x378] sm:$0xff]
    %v155 = vld [vmem:[%s1 + $0x380] sm:$0xff]
    %v156 = vld [vmem:[%s1 + $0x388] sm:$0xff]
    %v157 = vld [vmem:[%s1 + $0x390] sm:$0xff]
    %v158 = vld [vmem:[%s1 + $0x398] sm:$0xff]
    %v159 = vld [vmem:[%s1 + $0x3a0] sm:$0xff]
    %v160 = vld [vmem:[%s1 + $0x3a8] sm:$0xff]
    %v161 = vld [vmem:[%s1 + $0x3b0] sm:$0xff]
    %v162 = vld [vmem:[%s1 + $0x3b8] sm:$0xff]
    %v163 = vld [vmem:[%s1 + $0x3c0] sm:$0xff]
    %v164 = vld [vmem:[%s1 + $0x3c8] sm:$0xff]
    %v165 = vld [vmem:[%s1 + $0x3d0] sm:$0xff]
    %v166 = vld [vmem:[%s1 + $0x3d8] sm:$0xff]
    %v167 = vld [vmem:[%s1 + $0x3e0] sm:$0xff]
    %v168 = vld [vmem:[%s1 + $0x3e8] sm:$0xff]
    %v169 = vld [vmem:[%s1 + $0x3f0] sm:$0xff]
    %v170 = vld [vmem:[%s1 + $0x3f8] sm:$0xff]
    %v171 = vld [vmem:[%s1 + $0x400] sm:$0xff]
    %v172 = vld [vmem:[%s1 + $0x408] sm:$0xff]
    %v173 = vld [vmem:[%s1 + $0x410] sm:$0xff]
    %v174 = vld [vmem:[%s1 + $0x418] sm:$0xff]
    %v175 = vld [vmem:[%s1 + $0x420] sm:$0xff]
    %v176 = vld [vmem:[%s1 + $0x428] sm:$0xff]
    %v177 = vld [vmem:[%s1 + $0x430] sm:$0xff]
    %v178 = vld [vmem:[%s1 + $0x438] sm:$0xff]
    %v179 = vld [vmem:[%s1 + $0x440] sm:$0xff]
    %v180 = vld [vmem:[%s1 + $0x448] sm:$0xff]
    %v181 = vld [vmem:[%s1 + $0x450] sm:$0xff]
    %v182 = vld [vmem:[%s1 + $0x458] sm:$0xff]
    %v183 = vld [vmem:[%s1 + $0x460] sm:$0xff]
    %v184 = vld [vmem:[%s1 + $0x468] sm:$0xff]
    %v185 = vld [vmem:[%s1 + $0x470] sm:$0xff]
    %v186 = vld [vmem:[%s1 + $0x478] sm:$0xff]
    %v187 = vld [vmem:[%s1 + $0x480] sm:$0xff]
    %v188 = vld [vmem:[%s1 + $0x488] sm:$0xff]
    %v189 = vld [vmem:[%s1 + $0x490] sm:$0xff]
    %v190 = vld [vmem:[%s1 + $0x498] sm:$0xff]
    %v191 = vld [vmem:[%s1 + $0x4a0] sm:$0xff]
    %v192 = vld [vmem:[%s1 + $0x4a8] sm:$0xff]
    %v193 = vld [vmem:[%s1 + $0x4b0] sm:$0xff]
    %v194 = vld [vmem:[%s1 + $0x4b8] sm:$0xff]
    %v195 = vld [vmem:[%s1 + $0x4c0] sm:$0xff]
    %v196 = vld [vmem:[%s1 + $0x4c8] sm:$0xff]
    %v197 = vld [vmem:[%s1 + $0x4d0] sm:$0xff]
    %v198 = vld [vmem:[%s1 + $0x4d8] sm:$0xff]
    %v199 = vld [vmem:[%s1 + $0x4e0] sm:$0xff]
    %v200 = vld [vmem:[%s1 + $0x4e8] sm:$0xff]
    %v201 = vld [vmem:[%s1 + $0x4f0] sm:$0xff]
    %v202 = vld [vmem:[%s1 + $0x4f8] sm:$0xff]
    %v203 = vld [vmem:[%s1 + $0x500] sm:$0xff]
    %v204 = vld [vmem:[%s1 + $0x508] sm:$0xff]
    %v205 = vld [vmem:[%s1 + $0x510] sm:$0xff]
    %v206 = vld [vmem:[%s1 + $0x518] sm:$0xff]
    %v207 = vld [vmem:[%s1 + $0x520] sm:$0xff]
    %v208 = vld [vmem:[%s1 + $0x528] sm:$0xff]
    %v209 = vld [vmem:[%s1 + $0x530] sm:$0xff]
    %v210 = vld [vmem:[%s1 + $0x538] sm:$0xff]
    %v211 = vld [vmem:[%s1 + $0x540] sm:$0xff]
    %v212 = vld [vmem:[%s1 + $0x548] sm:$0xff]
    %v213 = vld [vmem:[%s1 + $0x550] sm:$0xff]
    %v214 = vld [vmem:[%s1 + $0x558] sm:$0xff]
    %v215 = vld [vmem:[%s1 + $0x560] sm:$0xff]
    %v216 = vld [vmem:[%s1 + $0x568] sm:$0xff]
    %v217 = vld [vmem:[%s1 + $0x570] sm:$0xff]
    %v218 = vld [vmem:[%s1 + $0x578] sm:$0xff]
    %v219 = vld [vmem:[%s1 + $0x580] sm:$0xff]
    %v220 = vld [vmem:[%s1 + $0x588] sm:$0xff]
    %v221 = vld [vmem:[%s1 + $0x590] sm:$0xff]
    %v222 = vld [vmem:[%s1 + $0x598] sm:$0xff]
    %v223 = vld [vmem:[%s1 + $0x5a0] sm:$0xff]
    %v224 = vld [vmem:[%s1 + $0x5a8] sm:$0xff]
    %v225 = vld [vmem:[%s1 + $0x5b0] sm:$0xff]
    %v226 = vld [vmem:[%s1 + $0x5b8] sm:$0xff]
    %v227 = vld [vmem:[%s1 + $0x5c0] sm:$0xff]
    %v228 = vld [vmem:[%s1 + $0x5c8] sm:$0xff]
    %v229 = vld [vmem:[%s1 + $0x5d0] sm:$0xff]
    %v230 = vld [vmem:[%s1 + $0x5d8] sm:$0xff]
    %v231 = vld [vmem:[%s1 + $0x5e0] sm:$0xff]
    %v232 = vld [vmem:[%s1 + $0x5e8] sm:$0xff]
    %v233 = vld [vmem:[%s1 + $0x5f0] sm:$0xff]
    %v234 = vld [vmem:[%s1 + $0x5f8] sm:$0xff]
    %v235 = vld [vmem:[%s1 + $0x600] sm:$0xff]
    %v236 = vld [vmem:[%s1 + $0x608] sm:$0xff]
    %v237 = vld [vmem:[%s1 + $0x610] sm:$0xff]
    %v238 = vld [vmem:[%s1 + $0x618] sm:$0xff]
    %v239 = vld [vmem:[%s1 + $0x620] sm:$0xff]
    %v240 = vld [vmem:[%s1 + $0x628] sm:$0xff]
    %v241 = vld [vmem:[%s1 + $0x630] sm:$0xff]
    %v242 = vld [vmem:[%s1 + $0x638] sm:$0xff]
    %v243 = vld [vmem:[%s1 + $0x640] sm:$0xff]
    %v244 = vld [vmem:[%s1 + $0x648] sm:$0xff]
    %v245 = vld [vmem:[%s1 + $0x650] sm:$0xff]
    %v246 = vld [vmem:[%s1 + $0x658] sm:$0xff]
    %v247 = vld [vmem:[%s1 + $0x660] sm:$0xff]
    %v248 = vld [vmem:[%s1 + $0x668] sm:$0xff]
    %v249 = vld [vmem:[%s1 + $0x670] sm:$0xff]
    %v250 = vld [vmem:[%s1 + $0x678] sm:$0xff]
    %v251 = vld [vmem:[%s1 + $0x680] sm:$0xff]
    %v252 = vld [vmem:[%s1 + $0x688] sm:$0xff]
    %v253 = vld [vmem:[%s1 + $0x690] sm:$0xff]
    %v254 = vld [vmem:[%s1 + $0x698] sm:$0xff]
    %v255 = vld [vmem:[%s1 + $0x6a0] sm:$0xff]
    %v256 = vld [vmem:[%s1 + $0x6a8] sm:$0xff]
    %v257 = vld [vmem:[%s1 + $0x6b0] sm:$0xff]
    %v258 = vld [vmem:[%s1 + $0x6b8] sm:$0xff]
    %v259 = vld [vmem:[%s1 + $0x6c0] sm:$0xff]
    %v260 = vld [vmem:[%s1 + $0x6c8] sm:$0xff]
    %v261 = vld [vmem:[%s1 + $0x6d0] sm:$0xff]
    %v262 = vld [vmem:[%s1 + $0x6d8] sm:$0xff]
    %v263 = vld [vmem:[%s1 + $0x6e0] sm:$0xff]
    %v264 = vld [vmem:[%s1 + $0x6e8] sm:$0xff]
    %v265 = vld [vmem:[%s1 + $0x6f0] sm:$0xff]
    %v266 = vld [vmem:[%s1 + $0x6f8] sm:$0xff]
    %v267 = vld [vmem:[%s1 + $0x700] sm:$0xff]
    %v268 = vld [vmem:[%s1 + $0x708] sm:$0xff]
    %v269 = vld [vmem:[%s1 + $0x710] sm:$0xff]
    %v270 = vld [vmem:[%s1 + $0x718] sm:$0xff]
    %v271 = vld [vmem:[%s1 + $0x720] sm:$0xff]
    %v272 = vld [vmem:[%s1 + $0x728] sm:$0xff]
    %v273 = vld [vmem:[%s1 + $0x730] sm:$0xff]
    %v274 = vld [vmem:[%s1 + $0x738] sm:$0xff]
    %v275 = vld [vmem:[%s1 + $0x740] sm:$0xff]
    %v276 = vld [vmem:[%s1 + $0x748] sm:$0xff]
    %v277 = vld [vmem:[%s1 + $0x750] sm:$0xff]
    %v278 = vld [vmem:[%s1 + $0x758] sm:$0xff]
    %vm279 = vcmask 719872
    %v281 = vsel %vm279, %v30, 0
    %v284 = vsel %vm279, %v34, 0
    %v287 = vsel %vm279, %v38, 0
    %v290 = vsel %vm279, %v42, 0
    %292 = vmatpush.msra.mxu0 %v103
    %293 = vmatpush.msra.mxu0 %v99
    %294 = vmatpush.msra.mxu0 %v95
    %295 = vmatpush.msra.mxu0 %v91
    %296 = vmatpush.msra.mxu0 %v87
    %297 = vmatpush.msra.mxu0 %v83
    %298 = vmatpush.msra.mxu0 %v79
    %299 = vmatpush.msra.mxu0 %v75
    %300 = vmatpush.msra.mxu0 %v71
    %301 = vmatpush.msra.mxu0 %v67
    %302 = vmatpush.msra.mxu0 %v63
    %303 = vmatpush.msra.mxu0 %v59
    %304 = vmatpush.msra.mxu0 %v55
    %305 = vmatpush.msra.mxu0 %v51
    %306 = vmatpush.msra.mxu0 %v47
    %307 = vmatpush.msra.mxu0 %v43
    %308 = vmatmul.f32.gmra.mxu0 %v27
    %v309 = vpop.f32.mrf.mxu0
    %v310 = vadd.f32 0.0, %v309
    %311 = vmatmul.f32.gmra.mxu0 %v31
    %v312 = vpop.f32.mrf.mxu0
    %v313 = vadd.f32 0.0, %v312
    %314 = vmatmul.f32.gmra.mxu0 %v35
    %v315 = vpop.f32.mrf.mxu0
    %v316 = vadd.f32 0.0, %v315
    %317 = vmatmul.f32.gmra.mxu0 %v39
    %v318 = vpop.f32.mrf.mxu0
    %v319 = vadd.f32 0.0, %v318
    %320 = vdwg.mxu0
    %321 = vmatpush.msra.mxu0 %v167
    %322 = vmatpush.msra.mxu0 %v163
    %323 = vmatpush.msra.mxu0 %v159
    %324 = vmatpush.msra.mxu0 %v155
    %325 = vmatpush.msra.mxu0 %v151
    %326 = vmatpush.msra.mxu0 %v147
    %327 = vmatpush.msra.mxu0 %v143
    %328 = vmatpush.msra.mxu0 %v139
    %329 = vmatpush.msra.mxu0 %v135
    %330 = vmatpush.msra.mxu0 %v131
    %331 = vmatpush.msra.mxu0 %v127
    %332 = vmatpush.msra.mxu0 %v123
    %333 = vmatpush.msra.mxu0 %v119
    %334 = vmatpush.msra.mxu0 %v115
    %335 = vmatpush.msra.mxu0 %v111
    %336 = vmatpush.msra.mxu0 %v107
    %337 = vmatmul.f32.gmra.mxu0 %v28
    %v338 = vpop.f32.mrf.mxu0
    %v339 = vadd.f32 %v310, %v338
    %340 = vmatmul.f32.gmra.mxu0 %v32
    %v341 = vpop.f32.mrf.mxu0
    %v342 = vadd.f32 %v313, %v341
    %343 = vmatmul.f32.gmra.mxu0 %v36
    %v344 = vpop.f32.mrf.mxu0
    %v345 = vadd.f32 %v316, %v344
    %346 = vmatmul.f32.gmra.mxu0 %v40
    %v347 = vpop.f32.mrf.mxu0
    %v348 = vadd.f32 %v319, %v347
    %349 = vdwg.mxu0
    %350 = vmatpush.msra.mxu0 %v231
    %351 = vmatpush.msra.mxu0 %v227
    %352 = vmatpush.msra.mxu0 %v223
    %353 = vmatpush.msra.mxu0 %v219
    %354 = vmatpush.msra.mxu0 %v215
    %355 = vmatpush.msra.mxu0 %v211
    %356 = vmatpush.msra.mxu0 %v207
    %357 = vmatpush.msra.mxu0 %v203
    %358 = vmatpush.msra.mxu0 %v199
    %359 = vmatpush.msra.mxu0 %v195
    %360 = vmatpush.msra.mxu0 %v191
    %361 = vmatpush.msra.mxu0 %v187
    %362 = vmatpush.msra.mxu0 %v183
    %363 = vmatpush.msra.mxu0 %v179
    %364 = vmatpush.msra.mxu0 %v175
    %365 = vmatpush.msra.mxu0 %v171
    %366 = vmatmul.f32.gmra.mxu0 %v29
    %v367 = vpop.f32.mrf.mxu0
    %v368 = vadd.f32 %v339, %v367
    %369 = vmatmul.f32.gmra.mxu0 %v33
    %v370 = vpop.f32.mrf.mxu0
    %v371 = vadd.f32 %v342, %v370
    %372 = vmatmul.f32.gmra.mxu0 %v37
    %v373 = vpop.f32.mrf.mxu0
    %v374 = vadd.f32 %v345, %v373
    %375 = vmatmul.f32.gmra.mxu0 %v41
    %v376 = vpop.f32.mrf.mxu0
    %v377 = vadd.f32 %v348, %v376
    %378 = vdwg.mxu0
    %379 = vmatpush.msra.mxu0 0.0
    %380 = vmatpush.msra.mxu0 0.0
    %381 = vmatpush.msra.mxu0 0.0
    %382 = vmatpush.msra.mxu0 0.0
    %383 = vmatpush.msra.mxu0 0.0
    %384 = vmatpush.msra.mxu0 %v275
    %385 = vmatpush.msra.mxu0 %v271
    %386 = vmatpush.msra.mxu0 %v267
    %387 = vmatpush.msra.mxu0 %v263
    %388 = vmatpush.msra.mxu0 %v259
    %389 = vmatpush.msra.mxu0 %v255
    %390 = vmatpush.msra.mxu0 %v251
    %391 = vmatpush.msra.mxu0 %v247
    %392 = vmatpush.msra.mxu0 %v243
    %393 = vmatpush.msra.mxu0 %v239
    %394 = vmatpush.msra.mxu0 %v235
    %395 = vmatmul.f32.gmra.mxu0 %v281
    %v396 = vpop.f32.mrf.mxu0
    %v397 = vadd.f32 %v368, %v396
    %398 = vmatmul.f32.gmra.mxu0 %v284
    %v399 = vpop.f32.mrf.mxu0
    %v400 = vadd.f32 %v371, %v399
    %401 = vmatmul.f32.gmra.mxu0 %v287
    %v402 = vpop.f32.mrf.mxu0
    %v403 = vadd.f32 %v374, %v402
    %404 = vmatmul.f32.gmra.mxu0 %v290
    %v405 = vpop.f32.mrf.mxu0
    %v406 = vadd.f32 %v377, %v405
    %407 = vdwg.mxu0
    %408 = vmatpush.msra.mxu0 %v104
    %409 = vmatpush.msra.mxu0 %v100
    %410 = vmatpush.msra.mxu0 %v96
    %411 = vmatpush.msra.mxu0 %v92
    %412 = vmatpush.msra.mxu0 %v88
    %413 = vmatpush.msra.mxu0 %v84
    %414 = vmatpush.msra.mxu0 %v80
    %415 = vmatpush.msra.mxu0 %v76
    %416 = vmatpush.msra.mxu0 %v72
    %417 = vmatpush.msra.mxu0 %v68
    %418 = vmatpush.msra.mxu0 %v64
    %419 = vmatpush.msra.mxu0 %v60
    %420 = vmatpush.msra.mxu0 %v56
    %421 = vmatpush.msra.mxu0 %v52
    %422 = vmatpush.msra.mxu0 %v48
    %423 = vmatpush.msra.mxu0 %v44
    %424 = vmatmul.f32.gmra.mxu0 %v27
    %v425 = vpop.f32.mrf.mxu0
    %v426 = vadd.f32 0.0, %v425
    %427 = vmatmul.f32.gmra.mxu0 %v31
    %v428 = vpop.f32.mrf.mxu0
    %v429 = vadd.f32 0.0, %v428
    %430 = vmatmul.f32.gmra.mxu0 %v35
    %v431 = vpop.f32.mrf.mxu0
    %v432 = vadd.f32 0.0, %v431
    %433 = vmatmul.f32.gmra.mxu0 %v39
    %v434 = vpop.f32.mrf.mxu0
    %v435 = vadd.f32 0.0, %v434
    %436 = vdwg.mxu0
    %437 = vmatpush.msra.mxu0 %v168
    %438 = vmatpush.msra.mxu0 %v164
    %439 = vmatpush.msra.mxu0 %v160
    %440 = vmatpush.msra.mxu0 %v156
    %441 = vmatpush.msra.mxu0 %v152
    %442 = vmatpush.msra.mxu0 %v148
    %443 = vmatpush.msra.mxu0 %v144
    %444 = vmatpush.msra.mxu0 %v140
    %445 = vmatpush.msra.mxu0 %v136
    %446 = vmatpush.msra.mxu0 %v132
    %447 = vmatpush.msra.mxu0 %v128
    %448 = vmatpush.msra.mxu0 %v124
    %449 = vmatpush.msra.mxu0 %v120
    %450 = vmatpush.msra.mxu0 %v116
    %451 = vmatpush.msra.mxu0 %v112
    %452 = vmatpush.msra.mxu0 %v108
    %453 = vmatmul.f32.gmra.mxu0 %v28
    %v454 = vpop.f32.mrf.mxu0
    %v455 = vadd.f32 %v426, %v454
    %456 = vmatmul.f32.gmra.mxu0 %v32
    %v457 = vpop.f32.mrf.mxu0
    %v458 = vadd.f32 %v429, %v457
    %459 = vmatmul.f32.gmra.mxu0 %v36
    %v460 = vpop.f32.mrf.mxu0
    %v461 = vadd.f32 %v432, %v460
    %462 = vmatmul.f32.gmra.mxu0 %v40
    %v463 = vpop.f32.mrf.mxu0
    %v464 = vadd.f32 %v435, %v463
    %465 = vdwg.mxu0
    %466 = vmatpush.msra.mxu0 %v232
    %467 = vmatpush.msra.mxu0 %v228
    %468 = vmatpush.msra.mxu0 %v224
    %469 = vmatpush.msra.mxu0 %v220
    %470 = vmatpush.msra.mxu0 %v216
    %471 = vmatpush.msra.mxu0 %v212
    %472 = vmatpush.msra.mxu0 %v208
    %473 = vmatpush.msra.mxu0 %v204
    %474 = vmatpush.msra.mxu0 %v200
    %475 = vmatpush.msra.mxu0 %v196
    %476 = vmatpush.msra.mxu0 %v192
    %477 = vmatpush.msra.mxu0 %v188
    %478 = vmatpush.msra.mxu0 %v184
    %479 = vmatpush.msra.mxu0 %v180
    %480 = vmatpush.msra.mxu0 %v176
    %481 = vmatpush.msra.mxu0 %v172
    %482 = vmatmul.f32.gmra.mxu0 %v29
    %v483 = vpop.f32.mrf.mxu0
    %v484 = vadd.f32 %v455, %v483
    %485 = vmatmul.f32.gmra.mxu0 %v33
    %v486 = vpop.f32.mrf.mxu0
    %v487 = vadd.f32 %v458, %v486
    %488 = vmatmul.f32.gmra.mxu0 %v37
    %v489 = vpop.f32.mrf.mxu0
    %v490 = vadd.f32 %v461, %v489
    %491 = vmatmul.f32.gmra.mxu0 %v41
    %v492 = vpop.f32.mrf.mxu0
    %v493 = vadd.f32 %v464, %v492
    %494 = vdwg.mxu0
    %495 = vmatpush.msra.mxu0 0.0
    %496 = vmatpush.msra.mxu0 0.0
    %497 = vmatpush.msra.mxu0 0.0
    %498 = vmatpush.msra.mxu0 0.0
    %499 = vmatpush.msra.mxu0 0.0
    %500 = vmatpush.msra.mxu0 %v276
    %501 = vmatpush.msra.mxu0 %v272
    %502 = vmatpush.msra.mxu0 %v268
    %503 = vmatpush.msra.mxu0 %v264
    %504 = vmatpush.msra.mxu0 %v260
    %505 = vmatpush.msra.mxu0 %v256
    %506 = vmatpush.msra.mxu0 %v252
    %507 = vmatpush.msra.mxu0 %v248
    %508 = vmatpush.msra.mxu0 %v244
    %509 = vmatpush.msra.mxu0 %v240
    %510 = vmatpush.msra.mxu0 %v236
    %511 = vmatmul.f32.gmra.mxu0 %v281
    %v512 = vpop.f32.mrf.mxu0
    %v513 = vadd.f32 %v484, %v512
    %514 = vmatmul.f32.gmra.mxu0 %v284
    %v515 = vpop.f32.mrf.mxu0
    %v516 = vadd.f32 %v487, %v515
    %517 = vmatmul.f32.gmra.mxu0 %v287
    %v518 = vpop.f32.mrf.mxu0
    %v519 = vadd.f32 %v490, %v518
    %520 = vmatmul.f32.gmra.mxu0 %v290
    %v521 = vpop.f32.mrf.mxu0
    %v522 = vadd.f32 %v493, %v521
    %523 = vdwg.mxu0
    %524 = vmatpush.msra.mxu0 %v105
    %525 = vmatpush.msra.mxu0 %v101
    %526 = vmatpush.msra.mxu0 %v97
    %527 = vmatpush.msra.mxu0 %v93
    %528 = vmatpush.msra.mxu0 %v89
    %529 = vmatpush.msra.mxu0 %v85
    %530 = vmatpush.msra.mxu0 %v81
    %531 = vmatpush.msra.mxu0 %v77
    %532 = vmatpush.msra.mxu0 %v73
    %533 = vmatpush.msra.mxu0 %v69
    %534 = vmatpush.msra.mxu0 %v65
    %535 = vmatpush.msra.mxu0 %v61
    %536 = vmatpush.msra.mxu0 %v57
    %537 = vmatpush.msra.mxu0 %v53
    %538 = vmatpush.msra.mxu0 %v49
    %539 = vmatpush.msra.mxu0 %v45
    %540 = vmatmul.f32.gmra.mxu0 %v27
    %v541 = vpop.f32.mrf.mxu0
    %v542 = vadd.f32 0.0, %v541
    %543 = vmatmul.f32.gmra.mxu0 %v31
    %v544 = vpop.f32.mrf.mxu0
    %v545 = vadd.f32 0.0, %v544
    %546 = vmatmul.f32.gmra.mxu0 %v35
    %v547 = vpop.f32.mrf.mxu0
    %v548 = vadd.f32 0.0, %v547
    %549 = vmatmul.f32.gmra.mxu0 %v39
    %v550 = vpop.f32.mrf.mxu0
    %v551 = vadd.f32 0.0, %v550
    %552 = vdwg.mxu0
    %553 = vmatpush.msra.mxu0 %v169
    %554 = vmatpush.msra.mxu0 %v165
    %555 = vmatpush.msra.mxu0 %v161
    %556 = vmatpush.msra.mxu0 %v157
    %557 = vmatpush.msra.mxu0 %v153
    %558 = vmatpush.msra.mxu0 %v149
    %559 = vmatpush.msra.mxu0 %v145
    %560 = vmatpush.msra.mxu0 %v141
    %561 = vmatpush.msra.mxu0 %v137
    %562 = vmatpush.msra.mxu0 %v133
    %563 = vmatpush.msra.mxu0 %v129
    %564 = vmatpush.msra.mxu0 %v125
    %565 = vmatpush.msra.mxu0 %v121
    %566 = vmatpush.msra.mxu0 %v117
    %567 = vmatpush.msra.mxu0 %v113
    %568 = vmatpush.msra.mxu0 %v109
    %569 = vmatmul.f32.gmra.mxu0 %v28
    %v570 = vpop.f32.mrf.mxu0
    %v571 = vadd.f32 %v542, %v570
    %572 = vmatmul.f32.gmra.mxu0 %v32
    %v573 = vpop.f32.mrf.mxu0
    %v574 = vadd.f32 %v545, %v573
    %575 = vmatmul.f32.gmra.mxu0 %v36
    %v576 = vpop.f32.mrf.mxu0
    %v577 = vadd.f32 %v548, %v576
    %578 = vmatmul.f32.gmra.mxu0 %v40
    %v579 = vpop.f32.mrf.mxu0
    %v580 = vadd.f32 %v551, %v579
    %581 = vdwg.mxu0
    %582 = vmatpush.msra.mxu0 %v233
    %583 = vmatpush.msra.mxu0 %v229
    %584 = vmatpush.msra.mxu0 %v225
    %585 = vmatpush.msra.mxu0 %v221
    %586 = vmatpush.msra.mxu0 %v217
    %587 = vmatpush.msra.mxu0 %v213
    %588 = vmatpush.msra.mxu0 %v209
    %589 = vmatpush.msra.mxu0 %v205
    %590 = vmatpush.msra.mxu0 %v201
    %591 = vmatpush.msra.mxu0 %v197
    %592 = vmatpush.msra.mxu0 %v193
    %593 = vmatpush.msra.mxu0 %v189
    %594 = vmatpush.msra.mxu0 %v185
    %595 = vmatpush.msra.mxu0 %v181
    %596 = vmatpush.msra.mxu0 %v177
    %597 = vmatpush.msra.mxu0 %v173
    %598 = vmatmul.f32.gmra.mxu0 %v29
    %v599 = vpop.f32.mrf.mxu0
    %v600 = vadd.f32 %v571, %v599
    %601 = vmatmul.f32.gmra.mxu0 %v33
    %v602 = vpop.f32.mrf.mxu0
    %v603 = vadd.f32 %v574, %v602
    %604 = vmatmul.f32.gmra.mxu0 %v37
    %v605 = vpop.f32.mrf.mxu0
    %v606 = vadd.f32 %v577, %v605
    %607 = vmatmul.f32.gmra.mxu0 %v41
    %v608 = vpop.f32.mrf.mxu0
    %v609 = vadd.f32 %v580, %v608
    %610 = vdwg.mxu0
    %611 = vmatpush.msra.mxu0 0.0
    %612 = vmatpush.msra.mxu0 0.0
    %613 = vmatpush.msra.mxu0 0.0
    %614 = vmatpush.msra.mxu0 0.0
    %615 = vmatpush.msra.mxu0 0.0
    %616 = vmatpush.msra.mxu0 %v277
    %617 = vmatpush.msra.mxu0 %v273
    %618 = vmatpush.msra.mxu0 %v269
    %619 = vmatpush.msra.mxu0 %v265
    %620 = vmatpush.msra.mxu0 %v261
    %621 = vmatpush.msra.mxu0 %v257
    %622 = vmatpush.msra.mxu0 %v253
    %623 = vmatpush.msra.mxu0 %v249
    %624 = vmatpush.msra.mxu0 %v245
    %625 = vmatpush.msra.mxu0 %v241
    %626 = vmatpush.msra.mxu0 %v237
    %627 = vmatmul.f32.gmra.mxu0 %v281
    %v628 = vpop.f32.mrf.mxu0
    %v629 = vadd.f32 %v600, %v628
    %630 = vmatmul.f32.gmra.mxu0 %v284
    %v631 = vpop.f32.mrf.mxu0
    %v632 = vadd.f32 %v603, %v631
    %633 = vmatmul.f32.gmra.mxu0 %v287
    %v634 = vpop.f32.mrf.mxu0
    %v635 = vadd.f32 %v606, %v634
    %636 = vmatmul.f32.gmra.mxu0 %v290
    %v637 = vpop.f32.mrf.mxu0
    %v638 = vadd.f32 %v609, %v637
    %639 = vdwg.mxu0
    %640 = vmatpush.msra.mxu0 %v106
    %641 = vmatpush.msra.mxu0 %v102
    %642 = vmatpush.msra.mxu0 %v98
    %643 = vmatpush.msra.mxu0 %v94
    %644 = vmatpush.msra.mxu0 %v90
    %645 = vmatpush.msra.mxu0 %v86
    %646 = vmatpush.msra.mxu0 %v82
    %647 = vmatpush.msra.mxu0 %v78
    %648 = vmatpush.msra.mxu0 %v74
    %649 = vmatpush.msra.mxu0 %v70
    %650 = vmatpush.msra.mxu0 %v66
    %651 = vmatpush.msra.mxu0 %v62
    %652 = vmatpush.msra.mxu0 %v58
    %653 = vmatpush.msra.mxu0 %v54
    %654 = vmatpush.msra.mxu0 %v50
    %655 = vmatpush.msra.mxu0 %v46
    %656 = vmatmul.f32.gmra.mxu0 %v27
    %v657 = vpop.f32.mrf.mxu0
    %v658 = vadd.f32 0.0, %v657
    %659 = vmatmul.f32.gmra.mxu0 %v31
    %v660 = vpop.f32.mrf.mxu0
    %v661 = vadd.f32 0.0, %v660
    %662 = vmatmul.f32.gmra.mxu0 %v35
    %v663 = vpop.f32.mrf.mxu0
    %v664 = vadd.f32 0.0, %v663
    %665 = vmatmul.f32.gmra.mxu0 %v39
    %v666 = vpop.f32.mrf.mxu0
    %v667 = vadd.f32 0.0, %v666
    %668 = vdwg.mxu0
    %669 = vmatpush.msra.mxu0 %v170
    %670 = vmatpush.msra.mxu0 %v166
    %671 = vmatpush.msra.mxu0 %v162
    %672 = vmatpush.msra.mxu0 %v158
    %673 = vmatpush.msra.mxu0 %v154
    %674 = vmatpush.msra.mxu0 %v150
    %675 = vmatpush.msra.mxu0 %v146
    %676 = vmatpush.msra.mxu0 %v142
    %677 = vmatpush.msra.mxu0 %v138
    %678 = vmatpush.msra.mxu0 %v134
    %679 = vmatpush.msra.mxu0 %v130
    %680 = vmatpush.msra.mxu0 %v126
    %681 = vmatpush.msra.mxu0 %v122
    %682 = vmatpush.msra.mxu0 %v118
    %683 = vmatpush.msra.mxu0 %v114
    %684 = vmatpush.msra.mxu0 %v110
    %685 = vmatmul.f32.gmra.mxu0 %v28
    %v686 = vpop.f32.mrf.mxu0
    %v687 = vadd.f32 %v658, %v686
    %688 = vmatmul.f32.gmra.mxu0 %v32
    %v689 = vpop.f32.mrf.mxu0
    %v690 = vadd.f32 %v661, %v689
    %691 = vmatmul.f32.gmra.mxu0 %v36
    %v692 = vpop.f32.mrf.mxu0
    %v693 = vadd.f32 %v664, %v692
    %694 = vmatmul.f32.gmra.mxu0 %v40
    %v695 = vpop.f32.mrf.mxu0
    %v696 = vadd.f32 %v667, %v695
    %697 = vdwg.mxu0
    %698 = vmatpush.msra.mxu0 %v234
    %699 = vmatpush.msra.mxu0 %v230
    %700 = vmatpush.msra.mxu0 %v226
    %701 = vmatpush.msra.mxu0 %v222
    %702 = vmatpush.msra.mxu0 %v218
    %703 = vmatpush.msra.mxu0 %v214
    %704 = vmatpush.msra.mxu0 %v210
    %705 = vmatpush.msra.mxu0 %v206
    %706 = vmatpush.msra.mxu0 %v202
    %707 = vmatpush.msra.mxu0 %v198
    %708 = vmatpush.msra.mxu0 %v194
    %709 = vmatpush.msra.mxu0 %v190
    %710 = vmatpush.msra.mxu0 %v186
    %711 = vmatpush.msra.mxu0 %v182
    %712 = vmatpush.msra.mxu0 %v178
    %713 = vmatpush.msra.mxu0 %v174
    %714 = vmatmul.f32.gmra.mxu0 %v29
    %v715 = vpop.f32.mrf.mxu0
    %v716 = vadd.f32 %v687, %v715
    %717 = vmatmul.f32.gmra.mxu0 %v33
    %v718 = vpop.f32.mrf.mxu0
    %v719 = vadd.f32 %v690, %v718
    %720 = vmatmul.f32.gmra.mxu0 %v37
    %v721 = vpop.f32.mrf.mxu0
    %v722 = vadd.f32 %v693, %v721
    %723 = vmatmul.f32.gmra.mxu0 %v41
    %v724 = vpop.f32.mrf.mxu0
    %v725 = vadd.f32 %v696, %v724
    %726 = vdwg.mxu0
    %727 = vmatpush.msra.mxu0 0.0
    %728 = vmatpush.msra.mxu0 0.0
    %729 = vmatpush.msra.mxu0 0.0
    %730 = vmatpush.msra.mxu0 0.0
    %731 = vmatpush.msra.mxu0 0.0
    %732 = vmatpush.msra.mxu0 %v278
    %733 = vmatpush.msra.mxu0 %v274
    %734 = vmatpush.msra.mxu0 %v270
    %735 = vmatpush.msra.mxu0 %v266
    %736 = vmatpush.msra.mxu0 %v262
    %737 = vmatpush.msra.mxu0 %v258
    %738 = vmatpush.msra.mxu0 %v254
    %739 = vmatpush.msra.mxu0 %v250
    %740 = vmatpush.msra.mxu0 %v246
    %741 = vmatpush.msra.mxu0 %v242
    %742 = vmatpush.msra.mxu0 %v238
    %743 = vmatmul.f32.gmra.mxu0 %v281
    %v744 = vpop.f32.mrf.mxu0
    %v745 = vadd.f32 %v716, %v744
    %746 = vmatmul.f32.gmra.mxu0 %v284
    %v747 = vpop.f32.mrf.mxu0
    %v748 = vadd.f32 %v719, %v747
    %749 = vmatmul.f32.gmra.mxu0 %v287
    %v750 = vpop.f32.mrf.mxu0
    %v751 = vadd.f32 %v722, %v750
    %752 = vmatmul.f32.gmra.mxu0 %v290
    %v753 = vpop.f32.mrf.mxu0
    %v754 = vadd.f32 %v725, %v753
    %755 = vdwg.mxu0
    %v756 = vmax.f32 %v397, 0.0
    %v757 = vmax.f32 %v513, 0.0
    %v758 = vmax.f32 %v629, 0.0
    %v759 = vmax.f32 %v745, 0.0
    %v760 = vmax.f32 %v400, 0.0
    %v761 = vmax.f32 %v516, 0.0
    %v762 = vmax.f32 %v632, 0.0
    %v763 = vmax.f32 %v748, 0.0
    %v764 = vmax.f32 %v403, 0.0
    %v765 = vmax.f32 %v519, 0.0
    %v766 = vmax.f32 %v635, 0.0
    %v767 = vmax.f32 %v751, 0.0
    %v768 = vmax.f32 %v406, 0.0
    %v769 = vmax.f32 %v522, 0.0
    %v770 = vmax.f32 %v638, 0.0
    %v771 = vmax.f32 %v754, 0.0
    %v772 = vmax.f32 %v756, %v757
    %v773 = vmax.f32 %v760, %v761
    %v774 = vmax.f32 %v764, %v765
    %v775 = vmax.f32 %v768, %v769
    %v776 = vmax.f32 %v758, %v759
    %v777 = vmax.f32 %v762, %v763
    %v778 = vmax.f32 %v766, %v767
    %v779 = vmax.f32 %v770, %v771
    %v780 = vmax.f32 %v772, %v776
    %v781 = vmax.f32 %v773, %v777
    %v782 = vmax.f32 %v774, %v778
    %v783 = vmax.f32 %v775, %v779
    %v784 = vld [vmem:[%s2] sm:$0xff]
    %v785 = vld [vmem:[%s2 + $0x8] sm:$0xff]
    %v786 = vld [vmem:[%s2 + $0x10] sm:$0xff]
    %v787 = vld [vmem:[%s2 + $0x18] sm:$0xff]
    %v788 = vld [vmem:[%s2 + $0x20] sm:$0xff]
    %v789 = vld [vmem:[%s2 + $0x28] sm:$0xff]
    %v790 = vld [vmem:[%s2 + $0x30] sm:$0xff]
    %v791 = vld [vmem:[%s2 + $0x38] sm:$0xff]
    %v792 = vld [vmem:[%s2 + $0x40] sm:$0xff]
    %v793 = vld [vmem:[%s2 + $0x48] sm:$0xff]
    %v794 = vld [vmem:[%s2 + $0x50] sm:$0xff]
    %v795 = vld [vmem:[%s2 + $0x58] sm:$0xff]
    %v796 = vld [vmem:[%s2 + $0x60] sm:$0xff]
    %v797 = vld [vmem:[%s2 + $0x68] sm:$0xff]
    %v798 = vld [vmem:[%s2 + $0x70] sm:$0xff]
    %v799 = vld [vmem:[%s2 + $0x78] sm:$0xff]
    %v800 = vld [vmem:[%s2 + $0x80] sm:$0xff]
    %v801 = vld [vmem:[%s2 + $0x88] sm:$0xff]
    %v802 = vld [vmem:[%s2 + $0x90] sm:$0xff]
    %v803 = vld [vmem:[%s2 + $0x98] sm:$0xff]
    %v804 = vld [vmem:[%s2 + $0xa0] sm:$0xff]
    %v805 = vld [vmem:[%s2 + $0xa8] sm:$0xff]
    %v806 = vld [vmem:[%s2 + $0xb0] sm:$0xff]
    %v807 = vld [vmem:[%s2 + $0xb8] sm:$0xff]
    %v808 = vld [vmem:[%s2 + $0xc0] sm:$0xff]
    %v809 = vld [vmem:[%s2 + $0xc8] sm:$0xff]
    %v810 = vld [vmem:[%s2 + $0xd0] sm:$0xff]
    %v811 = vld [vmem:[%s2 + $0xd8] sm:$0xff]
    %v812 = vld [vmem:[%s2 + $0xe0] sm:$0xff]
    %v813 = vld [vmem:[%s2 + $0xe8] sm:$0xff]
    %v814 = vld [vmem:[%s2 + $0xf0] sm:$0xff]
    %v815 = vld [vmem:[%s2 + $0xf8] sm:$0xff]
    %v816 = vld [vmem:[%s2 + $0x100] sm:$0xff]
    %v817 = vld [vmem:[%s2 + $0x108] sm:$0xff]
    %v818 = vld [vmem:[%s2 + $0x110] sm:$0xff]
    %v819 = vld [vmem:[%s2 + $0x118] sm:$0xff]
    %v820 = vld [vmem:[%s2 + $0x120] sm:$0xff]
    %v821 = vld [vmem:[%s2 + $0x128] sm:$0xff]
    %v822 = vld [vmem:[%s2 + $0x130] sm:$0xff]
    %v823 = vld [vmem:[%s2 + $0x138] sm:$0xff]
    %v824 = vld [vmem:[%s2 + $0x140] sm:$0xff]
    %v825 = vld [vmem:[%s2 + $0x148] sm:$0xff]
    %v826 = vld [vmem:[%s2 + $0x150] sm:$0xff]
    %v827 = vld [vmem:[%s2 + $0x158] sm:$0xff]
    %v828 = vld [vmem:[%s2 + $0x160] sm:$0xff]
    %v829 = vld [vmem:[%s2 + $0x168] sm:$0xff]
    %v830 = vld [vmem:[%s2 + $0x170] sm:$0xff]
    %v831 = vld [vmem:[%s2 + $0x178] sm:$0xff]
    %v832 = vld [vmem:[%s2 + $0x180] sm:$0xff]
    %v833 = vld [vmem:[%s2 + $0x188] sm:$0xff]
    %v834 = vld [vmem:[%s2 + $0x190] sm:$0xff]
    %v835 = vld [vmem:[%s2 + $0x198] sm:$0xff]
    %v836 = vld [vmem:[%s2 + $0x1a0] sm:$0xff]
    %v837 = vld [vmem:[%s2 + $0x1a8] sm:$0xff]
    %v838 = vld [vmem:[%s2 + $0x1b0] sm:$0xff]
    %v839 = vld [vmem:[%s2 + $0x1b8] sm:$0xff]
    %v840 = vld [vmem:[%s2 + $0x1c0] sm:$0xff]
    %v841 = vld [vmem:[%s2 + $0x1c8] sm:$0xff]
    %v842 = vld [vmem:[%s2 + $0x1d0] sm:$0xff]
    %v843 = vld [vmem:[%s2 + $0x1d8] sm:$0xff]
    %v844 = vld [vmem:[%s2 + $0x1e0] sm:$0xff]
    %v845 = vld [vmem:[%s2 + $0x1e8] sm:$0xff]
    %v846 = vld [vmem:[%s2 + $0x1f0] sm:$0xff]
    %v847 = vld [vmem:[%s2 + $0x1f8] sm:$0xff]
    %v848 = vld [vmem:[%s2 + $0x200] sm:$0xff]
    %v849 = vld [vmem:[%s2 + $0x208] sm:$0xff]
    %v850 = vld [vmem:[%s2 + $0x210] sm:$0xff]
    %v851 = vld [vmem:[%s2 + $0x218] sm:$0xff]
    %v852 = vld [vmem:[%s2 + $0x220] sm:$0xff]
    %v853 = vld [vmem:[%s2 + $0x228] sm:$0xff]
    %v854 = vld [vmem:[%s2 + $0x230] sm:$0xff]
    %v855 = vld [vmem:[%s2 + $0x238] sm:$0xff]
    %v856 = vld [vmem:[%s2 + $0x240] sm:$0xff]
    %v857 = vld [vmem:[%s2 + $0x248] sm:$0xff]
    %v858 = vld [vmem:[%s2 + $0x250] sm:$0xff]
    %v859 = vld [vmem:[%s2 + $0x258] sm:$0xff]
    %v860 = vld [vmem:[%s2 + $0x260] sm:$0xff]
    %v861 = vld [vmem:[%s2 + $0x268] sm:$0xff]
    %v862 = vld [vmem:[%s2 + $0x270] sm:$0xff]
    %v863 = vld [vmem:[%s2 + $0x278] sm:$0xff]
    %864 = vmatpush.msra.mxu0 %v859
    %865 = vmatpush.msra.mxu0 %v854
    %866 = vmatpush.msra.mxu0 %v849
    %867 = vmatpush.msra.mxu0 %v844
    %868 = vmatpush.msra.mxu0 %v839
    %869 = vmatpush.msra.mxu0 %v834
    %870 = vmatpush.msra.mxu0 %v829
    %871 = vmatpush.msra.mxu0 %v824
    %872 = vmatpush.msra.mxu0 %v819
    %873 = vmatpush.msra.mxu0 %v814
    %874 = vmatpush.msra.mxu0 %v809
    %875 = vmatpush.msra.mxu0 %v804
    %876 = vmatpush.msra.mxu0 %v799
    %877 = vmatpush.msra.mxu0 %v794
    %878 = vmatpush.msra.mxu0 %v789
    %879 = vmatpush.msra.mxu0 %v784
    %880 = vmatmul.f32.gmra.mxu0 %v780
    %v881 = vpop.f32.mrf.mxu0
    %v882 = vadd.f32 0.0, %v881
    %883 = vmatmul.f32.gmra.mxu0 %v781
    %v884 = vpop.f32.mrf.mxu0
    %v885 = vadd.f32 0.0, %v884
    %886 = vmatmul.f32.gmra.mxu0 %v782
    %v887 = vpop.f32.mrf.mxu0
    %v888 = vadd.f32 0.0, %v887
    %889 = vmatmul.f32.gmra.mxu0 %v783
    %v890 = vpop.f32.mrf.mxu0
    %891 = vdwg.mxu0
    %892 = vmatpush.msra.mxu0 %v860
    %893 = vmatpush.msra.mxu0 %v855
    %894 = vmatpush.msra.mxu0 %v850
    %895 = vmatpush.msra.mxu0 %v845
    %896 = vmatpush.msra.mxu0 %v840
    %897 = vmatpush.msra.mxu0 %v835
    %898 = vmatpush.msra.mxu0 %v830
    %899 = vmatpush.msra.mxu0 %v825
    %900 = vmatpush.msra.mxu0 %v820
    %901 = vmatpush.msra.mxu0 %v815
    %902 = vmatpush.msra.mxu0 %v810
    %903 = vmatpush.msra.mxu0 %v805
    %904 = vmatpush.msra.mxu0 %v800
    %905 = vmatpush.msra.mxu0 %v795
    %906 = vmatpush.msra.mxu0 %v790
    %907 = vmatpush.msra.mxu0 %v785
    %908 = vmatmul.f32.gmra.mxu0 %v780
    %v909 = vpop.f32.mrf.mxu0
    %v910 = vadd.f32 0.0, %v909
    %911 = vmatmul.f32.gmra.mxu0 %v781
    %v912 = vpop.f32.mrf.mxu0
    %v913 = vadd.f32 0.0, %v912
    %914 = vmatmul.f32.gmra.mxu0 %v782
    %v915 = vpop.f32.mrf.mxu0
    %v916 = vadd.f32 0.0, %v915
    %917 = vmatmul.f32.gmra.mxu0 %v783
    %v918 = vpop.f32.mrf.mxu0
    %919 = vdwg.mxu0
    %920 = vmatpush.msra.mxu0 %v861
    %921 = vmatpush.msra.mxu0 %v856
    %922 = vmatpush.msra.mxu0 %v851
    %923 = vmatpush.msra.mxu0 %v846
    %924 = vmatpush.msra.mxu0 %v841
    %925 = vmatpush.msra.mxu0 %v836
    %926 = vmatpush.msra.mxu0 %v831
    %927 = vmatpush.msra.mxu0 %v826
    %928 = vmatpush.msra.mxu0 %v821
    %929 = vmatpush.msra.mxu0 %v816
    %930 = vmatpush.msra.mxu0 %v811
    %931 = vmatpush.msra.mxu0 %v806
    %932 = vmatpush.msra.mxu0 %v801
    %933 = vmatpush.msra.mxu0 %v796
    %934 = vmatpush.msra.mxu0 %v791
    %935 = vmatpush.msra.mxu0 %v786
    %936 = vmatmul.f32.gmra.mxu0 %v780
    %v937 = vpop.f32.mrf.mxu0
    %v938 = vadd.f32 0.0, %v937
    %939 = vmatmul.f32.gmra.mxu0 %v781
    %v940 = vpop.f32.mrf.mxu0
    %v941 = vadd.f32 0.0, %v940
    %942 = vmatmul.f32.gmra.mxu0 %v782
    %v943 = vpop.f32.mrf.mxu0
    %v944 = vadd.f32 0.0, %v943
    %945 = vmatmul.f32.gmra.mxu0 %v783
    %v946 = vpop.f32.mrf.mxu0
    %947 = vdwg.mxu0
    %948 = vmatpush.msra.mxu0 %v862
    %949 = vmatpush.msra.mxu0 %v857
    %950 = vmatpush.msra.mxu0 %v852
    %951 = vmatpush.msra.mxu0 %v847
    %952 = vmatpush.msra.mxu0 %v842
    %953 = vmatpush.msra.mxu0 %v837
    %954 = vmatpush.msra.mxu0 %v832
    %955 = vmatpush.msra.mxu0 %v827
    %956 = vmatpush.msra.mxu0 %v822
    %957 = vmatpush.msra.mxu0 %v817
    %958 = vmatpush.msra.mxu0 %v812
    %959 = vmatpush.msra.mxu0 %v807
    %960 = vmatpush.msra.mxu0 %v802
    %961 = vmatpush.msra.mxu0 %v797
    %962 = vmatpush.msra.mxu0 %v792
    %963 = vmatpush.msra.mxu0 %v787
    %964 = vmatmul.f32.gmra.mxu0 %v780
    %v965 = vpop.f32.mrf.mxu0
    %v966 = vadd.f32 0.0, %v965
    %967 = vmatmul.f32.gmra.mxu0 %v781
    %v968 = vpop.f32.mrf.mxu0
    %v969 = vadd.f32 0.0, %v968
    %970 = vmatmul.f32.gmra.mxu0 %v782
    %v971 = vpop.f32.mrf.mxu0
    %v972 = vadd.f32 0.0, %v971
    %973 = vmatmul.f32.gmra.mxu0 %v783
    %v974 = vpop.f32.mrf.mxu0
    %975 = vdwg.mxu0
    %976 = vmatpush.msra.mxu0 %v863
    %977 = vmatpush.msra.mxu0 %v858
    %978 = vmatpush.msra.mxu0 %v853
    %979 = vmatpush.msra.mxu0 %v848
    %980 = vmatpush.msra.mxu0 %v843
    %981 = vmatpush.msra.mxu0 %v838
    %982 = vmatpush.msra.mxu0 %v833
    %983 = vmatpush.msra.mxu0 %v828
    %984 = vmatpush.msra.mxu0 %v823
    %985 = vmatpush.msra.mxu0 %v818
    %986 = vmatpush.msra.mxu0 %v813
    %987 = vmatpush.msra.mxu0 %v808
    %988 = vmatpush.msra.mxu0 %v803
    %989 = vmatpush.msra.mxu0 %v798
    %990 = vmatpush.msra.mxu0 %v793
    %991 = vmatpush.msra.mxu0 %v788
    %992 = vmatmul.f32.gmra.mxu0 %v780
    %v993 = vpop.f32.mrf.mxu0
    %994 = vmatmul.f32.gmra.mxu0 %v781
    %v995 = vpop.f32.mrf.mxu0
    %v996 = vadd.f32 0.0, %v995
    %997 = vmatmul.f32.gmra.mxu0 %v782
    %v998 = vpop.f32.mrf.mxu0
    %v999 = vadd.f32 0.0, %v998
    %1000 = vmatmul.f32.gmra.mxu0 %v783
    %v1001 = vpop.f32.mrf.mxu0
    %v1002 = vadd.f32 0.0, %v1001
    %1003 = vdwg.mxu0
    %vm1007 = vcmask 1045504
    %v1008 = vrot.slane %v910, 2
    %v1009 = vrot.slane %v913, 2
    %v1010 = vsel %vm1007, %v1008, %v1009
    %v1011 = vrot.slane %v916, 2
    %v1012 = vsel %vm1007, %v1009, %v1011
    %v1016 = vadd.f32 %v882, %v1010
    %v1017 = vadd.f32 %v885, %v1012
    %v1018 = vadd.f32 %v888, %v1011
    %vm1022 = vcmask 1043456
    %v1023 = vrot.slane %v938, 4
    %v1024 = vrot.slane %v941, 4
    %v1025 = vsel %vm1022, %v1023, %v1024
    %v1026 = vrot.slane %v944, 4
    %v1027 = vsel %vm1022, %v1024, %v1026
    %v1031 = vadd.f32 %v1016, %v1025
    %v1032 = vadd.f32 %v1017, %v1027
    %v1033 = vadd.f32 %v1018, %v1026
    %vm1037 = vcmask 1041408
    %v1038 = vrot.slane %v966, 6
    %v1039 = vrot.slane %v969, 6
    %v1040 = vsel %vm1037, %v1038, %v1039
    %v1041 = vrot.slane %v972, 6
    %v1042 = vsel %vm1037, %v1039, %v1041
    %v1046 = vadd.f32 %v1031, %v1040
    %v1047 = vadd.f32 %v1032, %v1042
    %v1048 = vadd.f32 %v1033, %v1041
    %v1049 = vadd.f32 %v1046, %v996
    %v1050 = vadd.f32 %v1047, %v999
    %v1051 = vadd.f32 %v1048, %v1002
    %v1052 = vmax.f32 %v1049, 0.0
    %v1053 = vmax.f32 %v1050, 0.0
    %v1054 = vmax.f32 %v1051, 0.0
    %v1055 = vld [vmem:[%s4 + $0x8] sm:$0xff]
    %v1056 = vld [vmem:[%s4 + $0x10] sm:$0xff]
    %v1057 = vld [vmem:[%s4 + $0x18] sm:$0xff]
    %v1058 = vld [vmem:[%s4 + $0x20] sm:$0xff]
    %v1059 = vld [vmem:[%s4 + $0x28] sm:$0xff]
    %v1060 = vld [vmem:[%s4 + $0x30] sm:$0xff]
    %v1061 = vld [vmem:[%s4 + $0x38] sm:$0xff]
    %v1062 = vld [vmem:[%s4 + $0x40] sm:$0xff]
    %v1063 = vld [vmem:[%s4 + $0x48] sm:$0xff]
    %v1064 = vld [vmem:[%s4 + $0x50] sm:$0xff]
    %v1065 = vld [vmem:[%s4 + $0x58] sm:$0xff]
    %v1066 = vld [vmem:[%s4 + $0x60] sm:$0xff]
    %v1067 = vld [vmem:[%s4 + $0x68] sm:$0xff]
    %v1068 = vld [vmem:[%s4 + $0x70] sm:$0xff]
    %v1069 = vld [vmem:[%s4 + $0x78] sm:$0xff]
    %v1070 = vld [vmem:[%s4 + $0x80] sm:$0xff]
    %v1071 = vld [vmem:[%s3] sm:$0xff]
    %v1072 = vld [vmem:[%s3 + $0x8] sm:$0xff]
    %v1073 = vld [vmem:[%s3 + $0x10] sm:$0x3]
    %vm1074 = vcmask 146432
    %v1076 = vsel %vm1074, %v1071, 0
    %v1079 = vsel %vm1074, %v1072, 0
    %v1082 = vsel %vm1074, %v1073, 0
    %v1085 = vsel %vm1037, %v1054, 0
    %1087 = vmatpush.msra.mxu0 0.0
    %1088 = vmatpush.msra.mxu0 0.0
    %1089 = vmatpush.msra.mxu0 0.0
    %1090 = vmatpush.msra.mxu0 0.0
    %1091 = vmatpush.msra.mxu0 0.0
    %1092 = vmatpush.msra.mxu0 0.0
    %1093 = vmatpush.msra.mxu0 0.0
    %1094 = vmatpush.msra.mxu0 0.0
    %1095 = vmatpush.msra.mxu0 0.0
    %1096 = vmatpush.msra.mxu0 0.0
    %1097 = vmatpush.msra.mxu0 0.0
    %1098 = vmatpush.msra.mxu0 0.0
    %1099 = vmatpush.msra.mxu0 0.0
    %1100 = vmatpush.msra.mxu0 %v1085
    %1101 = vmatpush.msra.mxu0 %v1053
    %1102 = vmatpush.msra.mxu0 %v1052
    %1103 = vmatmul.f32.gmra.mxu0 %v1076
    %v1104 = vpop.f32.mrf.mxu0
    %v1105 = vadd.f32 0.0, %v1104
    %1106 = vmatmul.f32.gmra.mxu0 %v1079
    %v1107 = vpop.f32.mrf.mxu0
    %v1108 = vadd.f32 0.0, %v1107
    %1109 = vmatmul.f32.gmra.mxu0 %v1082
    %v1110 = vpop.f32.mrf.mxu0
    %v1111 = vadd.f32 0.0, %v1110
    %1112 = vdwg.mxu0
    %1113 = vmatpush.msra.mxu0 %v1070
    %1114 = vmatpush.msra.mxu0 %v1069
    %1115 = vmatpush.msra.mxu0 %v1068
    %1116 = vmatpush.msra.mxu0 %v1067
    %1117 = vmatpush.msra.mxu0 %v1066
    %1118 = vmatpush.msra.mxu0 %v1065
    %1119 = vmatpush.msra.mxu0 %v1064
    %1120 = vmatpush.msra.mxu0 %v1063
    %1121 = vmatpush.msra.mxu0 %v1062
    %1122 = vmatpush.msra.mxu0 %v1061
    %1123 = vmatpush.msra.mxu0 %v1060
    %1124 = vmatpush.msra.mxu0 %v1059
    %1125 = vmatpush.msra.mxu0 %v1058
    %1126 = vmatpush.msra.mxu0 %v1057
    %1127 = vmatpush.msra.mxu0 %v1056
    %1128 = vmatpush.msra.mxu0 %v1055
    %1129 = vmatmul.f32.gmra.mxu0 %v1105
    %v1130 = vpop.f32.mrf.mxu0
    %v1131 = vadd.f32 0.0, %v1130
    %1132 = vmatmul.f32.gmra.mxu0 %v1108
    %v1133 = vpop.f32.mrf.mxu0
    %v1134 = vadd.f32 0.0, %v1133
    %1135 = vmatmul.f32.gmra.mxu0 %v1111
    %v1136 = vpop.f32.mrf.mxu0
    %v1137 = vadd.f32 0.0, %v1136
    %1138 = vdwg.mxu0
    %v1139 = vsub.f32 %v1052, %v1131
    %v1140 = vsub.f32 %v1053, %v1134
    %v1141 = vsub.f32 %v1054, %v1137
    %v1142 = vmul.f32 %v1139, %v1139
    %v1143 = vmul.f32 %v1140, %v1140
    %v1144 = vmul.f32 %v1141, %v1141
    %v1146 = vsel %vm1037, %v1144, 0
    %1148 = vmatpush.msra.mxu0 0.0
    %1149 = vmatpush.msra.mxu0 0.0
    %1150 = vmatpush.msra.mxu0 0.0
    %1151 = vmatpush.msra.mxu0 0.0
    %1152 = vmatpush.msra.mxu0 0.0
    %1153 = vmatpush.msra.mxu0 0.0
    %1154 = vmatpush.msra.mxu0 0.0
    %1155 = vmatpush.msra.mxu0 0.0
    %1156 = vmatpush.msra.mxu0 0.0
    %1157 = vmatpush.msra.mxu0 0.0
    %1158 = vmatpush.msra.mxu0 0.0
    %1159 = vmatpush.msra.mxu0 0.0
    %1160 = vmatpush.msra.mxu0 0.0
    %1161 = vmatpush.msra.mxu0 %v1146
    %1162 = vmatpush.msra.mxu0 %v1143
    %1163 = vmatpush.msra.mxu0 %v1142
    %1164 = vmatmul.f32.gmra.mxu0 %v1076
    %v1165 = vpop.f32.mrf.mxu0
    %v1166 = vadd.f32 0.0, %v1165
    %1167 = vmatmul.f32.gmra.mxu0 %v1079
    %v1168 = vpop.f32.mrf.mxu0
    %v1169 = vadd.f32 0.0, %v1168
    %1170 = vmatmul.f32.gmra.mxu0 %v1082
    %v1171 = vpop.f32.mrf.mxu0
    %v1172 = vadd.f32 0.0, %v1171
    %1173 = vdwg.mxu0
    %1174 = vmatpush.msra.mxu0 %v1070
    %1175 = vmatpush.msra.mxu0 %v1069
    %1176 = vmatpush.msra.mxu0 %v1068
    %1177 = vmatpush.msra.mxu0 %v1067
    %1178 = vmatpush.msra.mxu0 %v1066
    %1179 = vmatpush.msra.mxu0 %v1065
    %1180 = vmatpush.msra.mxu0 %v1064
    %1181 = vmatpush.msra.mxu0 %v1063
    %1182 = vmatpush.msra.mxu0 %v1062
    %1183 = vmatpush.msra.mxu0 %v1061
    %1184 = vmatpush.msra.mxu0 %v1060
    %1185 = vmatpush.msra.mxu0 %v1059
    %1186 = vmatpush.msra.mxu0 %v1058
    %1187 = vmatpush.msra.mxu0 %v1057
    %1188 = vmatpush.msra.mxu0 %v1056
    %1189 = vmatpush.msra.mxu0 %v1055
    %1190 = vmatmul.f32.gmra.mxu0 %v1166
    %v1191 = vpop.f32.mrf.mxu0
    %v1192 = vadd.f32 1e-05, %v1191
    %1193 = vmatmul.f32.gmra.mxu0 %v1169
    %v1194 = vpop.f32.mrf.mxu0
    %v1195 = vadd.f32 1e-05, %v1194
    %1196 = vmatmul.f32.gmra.mxu0 %v1172
    %v1197 = vpop.f32.mrf.mxu0
    %v1198 = vadd.f32 1e-05, %v1197
    %1199 = vdwg.mxu0
    %v1200 = vrsqrt.pop %v1192
    %v1201 = vmul.f32 %v1200, %v1192
    %v1202 = vmul.f32 %v1201, %v1200
    %v1203 = vmul.f32 0.5, %v1202
    %v1204 = vsub.f32 1.5, %v1203
    %v1205 = vmul.f32 %v1200, %v1204
    %vm1206 = vweird.f32 %v1192
    %vm1207 = vweird.f32 %v1200
    %vm1208 = vmor %vm1206, %vm1207
    %v1209 = vsel %vm1208, %v1200, %v1205
    %v1210 = vrsqrt.pop %v1195
    %v1211 = vmul.f32 %v1210, %v1195
    %v1212 = vmul.f32 %v1211, %v1210
    %v1213 = vmul.f32 0.5, %v1212
    %v1214 = vsub.f32 1.5, %v1213
    %v1215 = vmul.f32 %v1210, %v1214
    %vm1216 = vweird.f32 %v1195
    %vm1217 = vweird.f32 %v1210
    %vm1218 = vmor %vm1216, %vm1217
    %v1219 = vsel %vm1218, %v1210, %v1215
    %v1220 = vrsqrt.pop %v1198
    %v1221 = vmul.f32 %v1220, %v1198
    %v1222 = vmul.f32 %v1221, %v1220
    %v1223 = vmul.f32 0.5, %v1222
    %v1224 = vsub.f32 1.5, %v1223
    %v1225 = vmul.f32 %v1220, %v1224
    %vm1226 = vweird.f32 %v1198
    %vm1227 = vweird.f32 %v1220
    %vm1228 = vmor %vm1226, %vm1227
    %v1229 = vsel %vm1228, %v1220, %v1225
    %v1230 = vmul.f32 %v1139, %v1209
    %v1231 = vmul.f32 %v1140, %v1219
    %v1232 = vmul.f32 %v1141, %v1229
    %v1233 = vld [vmem:[%s4] sm:$0x1]
    %v1234 = vperm.slane %v1233, 0
    %v1235 = vmul.f32 %v1230, %v1234
    %v1236 = vmul.f32 %v1231, %v1234
    %v1237 = vmul.f32 %v1232, %v1234
    %v1238 = vld [vmem:[%s4 + $0x1] sm:$0x1]
    %v1239 = vperm.slane %v1238, 0
    %v1240 = vadd.f32 %v1235, %v1239
    %v1241 = vadd.f32 %v1236, %v1239
    %v1242 = vadd.f32 %v1237, %v1239
    %v1243 = vld [vmem:[%s5] sm:$0xff]
    %v1244 = vld [vmem:[%s5 + $0x8] sm:$0xff]
    %v1245 = vld [vmem:[%s5 + $0x10] sm:$0xff]
    %v1246 = vld [vmem:[%s5 + $0x18] sm:$0xff]
    %v1247 = vld [vmem:[%s5 + $0x20] sm:$0xff]
    %v1248 = vld [vmem:[%s5 + $0x28] sm:$0xff]
    %v1249 = vld [vmem:[%s5 + $0x30] sm:$0xff]
    %v1250 = vld [vmem:[%s5 + $0x38] sm:$0xff]
    %v1251 = vld [vmem:[%s5 + $0x40] sm:$0xff]
    %v1252 = vld [vmem:[%s5 + $0x48] sm:$0xff]
    %v1253 = vld [vmem:[%s5 + $0x50] sm:$0xff]
    %v1254 = vld [vmem:[%s5 + $0x58] sm:$0xff]
    %v1255 = vld [vmem:[%s5 + $0x60] sm:$0xff]
    %v1256 = vld [vmem:[%s5 + $0x68] sm:$0xff]
    %v1257 = vld [vmem:[%s5 + $0x70] sm:$0xff]
    %v1258 = vld [vmem:[%s5 + $0x78] sm:$0xff]
    %v1259 = vld [vmem:[%s5 + $0x80] sm:$0xff]
    %v1260 = vld [vmem:[%s5 + $0x88] sm:$0xff]
    %v1261 = vld [vmem:[%s5 + $0x90] sm:$0xff]
    %v1262 = vld [vmem:[%s5 + $0x98] sm:$0xff]
    %v1263 = vld [vmem:[%s5 + $0xa0] sm:$0xff]
    %v1264 = vld [vmem:[%s5 + $0xa8] sm:$0xff]
    %v1265 = vld [vmem:[%s5 + $0xb0] sm:$0xff]
    %v1266 = vld [vmem:[%s5 + $0xb8] sm:$0xff]
    %v1267 = vld [vmem:[%s5 + $0xc0] sm:$0xff]
    %v1268 = vld [vmem:[%s5 + $0xc8] sm:$0xff]
    %v1269 = vld [vmem:[%s5 + $0xd0] sm:$0xff]
    %v1270 = vld [vmem:[%s5 + $0xd8] sm:$0xff]
    %v1271 = vld [vmem:[%s5 + $0xe0] sm:$0xff]
    %v1272 = vld [vmem:[%s5 + $0xe8] sm:$0xff]
    %v1273 = vld [vmem:[%s5 + $0xf0] sm:$0xff]
    %v1274 = vld [vmem:[%s5 + $0xf8] sm:$0xff]
    %v1276 = vrot.slane %v1240, 2
    %1278 = vmatpush.msra.mxu0 %v1274
    %1279 = vmatpush.msra.mxu0 %v1273
    %1280 = vmatpush.msra.mxu0 %v1272
    %1281 = vmatpush.msra.mxu0 %v1271
    %1282 = vmatpush.msra.mxu0 %v1270
    %1283 = vmatpush.msra.mxu0 %v1269
    %1284 = vmatpush.msra.mxu0 %v1268
    %1285 = vmatpush.msra.mxu0 %v1267
    %1286 = vmatpush.msra.mxu0 %v1266
    %1287 = vmatpush.msra.mxu0 %v1265
    %1288 = vmatpush.msra.mxu0 %v1264
    %1289 = vmatpush.msra.mxu0 %v1263
    %1290 = vmatpush.msra.mxu0 %v1262
    %1291 = vmatpush.msra.mxu0 %v1261
    %1292 = vmatpush.msra.mxu0 %v1260
    %1293 = vmatpush.msra.mxu0 %v1259
    %1294 = vmatmul.f32.gmra.mxu0 %v1276
    %v1295 = vpop.f32.mrf.mxu0
    %v1296 = vadd.f32 0.0, %v1295
    %1297 = vdwg.mxu0
    %1298 = vmatpush.msra.mxu0 %v1258
    %1299 = vmatpush.msra.mxu0 %v1257
    %1300 = vmatpush.msra.mxu0 %v1256
    %1301 = vmatpush.msra.mxu0 %v1255
    %1302 = vmatpush.msra.mxu0 %v1254
    %1303 = vmatpush.msra.mxu0 %v1253
    %1304 = vmatpush.msra.mxu0 %v1252
    %1305 = vmatpush.msra.mxu0 %v1251
    %1306 = vmatpush.msra.mxu0 %v1250
    %1307 = vmatpush.msra.mxu0 %v1249
    %1308 = vmatpush.msra.mxu0 %v1248
    %1309 = vmatpush.msra.mxu0 %v1247
    %1310 = vmatpush.msra.mxu0 %v1246
    %1311 = vmatpush.msra.mxu0 %v1245
    %1312 = vmatpush.msra.mxu0 %v1244
    %1313 = vmatpush.msra.mxu0 %v1243
    %1314 = vmatmul.f32.gmra.mxu0 %v1240
    %v1315 = vpop.f32.mrf.mxu0
    %v1316 = vadd.f32 %v1296, %v1315
    %1317 = vdwg.mxu0
    %v1318 = vld [vmem:[%s5 + $0x100] sm:$0xff]
    %v1319 = vld [vmem:[%s5 + $0x108] sm:$0xff]
    %v1320 = vld [vmem:[%s5 + $0x110] sm:$0xff]
    %v1321 = vld [vmem:[%s5 + $0x118] sm:$0xff]
    %v1322 = vld [vmem:[%s5 + $0x120] sm:$0xff]
    %v1323 = vld [vmem:[%s5 + $0x128] sm:$0xff]
    %v1324 = vld [vmem:[%s5 + $0x130] sm:$0xff]
    %v1325 = vld [vmem:[%s5 + $0x138] sm:$0xff]
    %v1326 = vld [vmem:[%s5 + $0x140] sm:$0xff]
    %v1327 = vld [vmem:[%s5 + $0x148] sm:$0xff]
    %v1328 = vld [vmem:[%s5 + $0x150] sm:$0xff]
    %v1329 = vld [vmem:[%s5 + $0x158] sm:$0xff]
    %v1330 = vld [vmem:[%s5 + $0x160] sm:$0xff]
    %v1331 = vld [vmem:[%s5 + $0x168] sm:$0xff]
    %v1332 = vld [vmem:[%s5 + $0x170] sm:$0xff]
    %v1333 = vld [vmem:[%s5 + $0x178] sm:$0xff]
    %v1334 = vrot.slane %v1240, 4
    %1336 = vmatpush.msra.mxu0 %v1333
    %1337 = vmatpush.msra.mxu0 %v1332
    %1338 = vmatpush.msra.mxu0 %v1331
    %1339 = vmatpush.msra.mxu0 %v1330
    %1340 = vmatpush.msra.mxu0 %v1329
    %1341 = vmatpush.msra.mxu0 %v1328
    %1342 = vmatpush.msra.mxu0 %v1327
    %1343 = vmatpush.msra.mxu0 %v1326
    %1344 = vmatpush.msra.mxu0 %v1325
    %1345 = vmatpush.msra.mxu0 %v1324
    %1346 = vmatpush.msra.mxu0 %v1323
    %1347 = vmatpush.msra.mxu0 %v1322
    %1348 = vmatpush.msra.mxu0 %v1321
    %1349 = vmatpush.msra.mxu0 %v1320
    %1350 = vmatpush.msra.mxu0 %v1319
    %1351 = vmatpush.msra.mxu0 %v1318
    %1352 = vmatmul.f32.gmra.mxu0 %v1334
    %v1353 = vpop.f32.mrf.mxu0
    %v1354 = vadd.f32 0.0, %v1353
    %1355 = vdwg.mxu0
    %v1356 = vadd.f32 %v1316, %v1354
    %v1357 = vld [vmem:[%s5 + $0x180] sm:$0xff]
    %v1358 = vld [vmem:[%s5 + $0x188] sm:$0xff]
    %v1359 = vld [vmem:[%s5 + $0x190] sm:$0xff]
    %v1360 = vld [vmem:[%s5 + $0x198] sm:$0xff]
    %v1361 = vld [vmem:[%s5 + $0x1a0] sm:$0xff]
    %v1362 = vld [vmem:[%s5 + $0x1a8] sm:$0xff]
    %v1363 = vld [vmem:[%s5 + $0x1b0] sm:$0xff]
    %v1364 = vld [vmem:[%s5 + $0x1b8] sm:$0xff]
    %v1365 = vld [vmem:[%s5 + $0x1c0] sm:$0xff]
    %v1366 = vld [vmem:[%s5 + $0x1c8] sm:$0xff]
    %v1367 = vld [vmem:[%s5 + $0x1d0] sm:$0xff]
    %v1368 = vld [vmem:[%s5 + $0x1d8] sm:$0xff]
    %v1369 = vld [vmem:[%s5 + $0x1e0] sm:$0xff]
    %v1370 = vld [vmem:[%s5 + $0x1e8] sm:$0xff]
    %v1371 = vld [vmem:[%s5 + $0x1f0] sm:$0xff]
    %v1372 = vld [vmem:[%s5 + $0x1f8] sm:$0xff]
    %v1373 = vrot.slane %v1240, 6
    %1375 = vmatpush.msra.mxu0 %v1372
    %1376 = vmatpush.msra.mxu0 %v1371
    %1377 = vmatpush.msra.mxu0 %v1370
    %1378 = vmatpush.msra.mxu0 %v1369
    %1379 = vmatpush.msra.mxu0 %v1368
    %1380 = vmatpush.msra.mxu0 %v1367
    %1381 = vmatpush.msra.mxu0 %v1366
    %1382 = vmatpush.msra.mxu0 %v1365
    %1383 = vmatpush.msra.mxu0 %v1364
    %1384 = vmatpush.msra.mxu0 %v1363
    %1385 = vmatpush.msra.mxu0 %v1362
    %1386 = vmatpush.msra.mxu0 %v1361
    %1387 = vmatpush.msra.mxu0 %v1360
    %1388 = vmatpush.msra.mxu0 %v1359
    %1389 = vmatpush.msra.mxu0 %v1358
    %1390 = vmatpush.msra.mxu0 %v1357
    %1391 = vmatmul.f32.gmra.mxu0 %v1373
    %v1392 = vpop.f32.mrf.mxu0
    %v1393 = vadd.f32 0.0, %v1392
    %1394 = vdwg.mxu0
    %v1395 = vadd.f32 %v1356, %v1393
    %v1396 = vld [vmem:[%s5 + $0x200] sm:$0xff]
    %v1397 = vld [vmem:[%s5 + $0x208] sm:$0xff]
    %v1398 = vld [vmem:[%s5 + $0x210] sm:$0xff]
    %v1399 = vld [vmem:[%s5 + $0x218] sm:$0xff]
    %v1400 = vld [vmem:[%s5 + $0x220] sm:$0xff]
    %v1401 = vld [vmem:[%s5 + $0x228] sm:$0xff]
    %v1402 = vld [vmem:[%s5 + $0x230] sm:$0xff]
    %v1403 = vld [vmem:[%s5 + $0x238] sm:$0xff]
    %v1404 = vld [vmem:[%s5 + $0x240] sm:$0xff]
    %v1405 = vld [vmem:[%s5 + $0x248] sm:$0xff]
    %v1406 = vld [vmem:[%s5 + $0x250] sm:$0xff]
    %v1407 = vld [vmem:[%s5 + $0x258] sm:$0xff]
    %v1408 = vld [vmem:[%s5 + $0x260] sm:$0xff]
    %v1409 = vld [vmem:[%s5 + $0x268] sm:$0xff]
    %v1410 = vld [vmem:[%s5 + $0x270] sm:$0xff]
    %v1411 = vld [vmem:[%s5 + $0x278] sm:$0xff]
    %1412 = vmatpush.msra.mxu0 %v1411
    %1413 = vmatpush.msra.mxu0 %v1410
    %1414 = vmatpush.msra.mxu0 %v1409
    %1415 = vmatpush.msra.mxu0 %v1408
    %1416 = vmatpush.msra.mxu0 %v1407
    %1417 = vmatpush.msra.mxu0 %v1406
    %1418 = vmatpush.msra.mxu0 %v1405
    %1419 = vmatpush.msra.mxu0 %v1404
    %1420 = vmatpush.msra.mxu0 %v1403
    %1421 = vmatpush.msra.mxu0 %v1402
    %1422 = vmatpush.msra.mxu0 %v1401
    %1423 = vmatpush.msra.mxu0 %v1400
    %1424 = vmatpush.msra.mxu0 %v1399
    %1425 = vmatpush.msra.mxu0 %v1398
    %1426 = vmatpush.msra.mxu0 %v1397
    %1427 = vmatpush.msra.mxu0 %v1396
    %1428 = vmatmul.f32.gmra.mxu0 %v1241
    %v1429 = vpop.f32.mrf.mxu0
    %v1430 = vadd.f32 0.0, %v1429
    %1431 = vdwg.mxu0
    %v1432 = vadd.f32 %v1395, %v1430
    %v1433 = vld [vmem:[%s5 + $0x280] sm:$0xff]
    %v1434 = vld [vmem:[%s5 + $0x288] sm:$0xff]
    %v1435 = vld [vmem:[%s5 + $0x290] sm:$0xff]
    %v1436 = vld [vmem:[%s5 + $0x298] sm:$0xff]
    %v1437 = vld [vmem:[%s5 + $0x2a0] sm:$0xff]
    %v1438 = vld [vmem:[%s5 + $0x2a8] sm:$0xff]
    %v1439 = vld [vmem:[%s5 + $0x2b0] sm:$0xff]
    %v1440 = vld [vmem:[%s5 + $0x2b8] sm:$0xff]
    %v1441 = vld [vmem:[%s5 + $0x2c0] sm:$0xff]
    %v1442 = vld [vmem:[%s5 + $0x2c8] sm:$0xff]
    %v1443 = vld [vmem:[%s5 + $0x2d0] sm:$0xff]
    %v1444 = vld [vmem:[%s5 + $0x2d8] sm:$0xff]
    %v1445 = vld [vmem:[%s5 + $0x2e0] sm:$0xff]
    %v1446 = vld [vmem:[%s5 + $0x2e8] sm:$0xff]
    %v1447 = vld [vmem:[%s5 + $0x2f0] sm:$0xff]
    %v1448 = vld [vmem:[%s5 + $0x2f8] sm:$0xff]
    %v1450 = vrot.slane %v1241, 2
    %1452 = vmatpush.msra.mxu0 %v1448
    %1453 = vmatpush.msra.mxu0 %v1447
    %1454 = vmatpush.msra.mxu0 %v1446
    %1455 = vmatpush.msra.mxu0 %v1445
    %1456 = vmatpush.msra.mxu0 %v1444
    %1457 = vmatpush.msra.mxu0 %v1443
    %1458 = vmatpush.msra.mxu0 %v1442
    %1459 = vmatpush.msra.mxu0 %v1441
    %1460 = vmatpush.msra.mxu0 %v1440
    %1461 = vmatpush.msra.mxu0 %v1439
    %1462 = vmatpush.msra.mxu0 %v1438
    %1463 = vmatpush.msra.mxu0 %v1437
    %1464 = vmatpush.msra.mxu0 %v1436
    %1465 = vmatpush.msra.mxu0 %v1435
    %1466 = vmatpush.msra.mxu0 %v1434
    %1467 = vmatpush.msra.mxu0 %v1433
    %1468 = vmatmul.f32.gmra.mxu0 %v1450
    %v1469 = vpop.f32.mrf.mxu0
    %v1470 = vadd.f32 0.0, %v1469
    %1471 = vdwg.mxu0
    %v1472 = vadd.f32 %v1432, %v1470
    %v1473 = vld [vmem:[%s5 + $0x300] sm:$0xff]
    %v1474 = vld [vmem:[%s5 + $0x308] sm:$0xff]
    %v1475 = vld [vmem:[%s5 + $0x310] sm:$0xff]
    %v1476 = vld [vmem:[%s5 + $0x318] sm:$0xff]
    %v1477 = vld [vmem:[%s5 + $0x320] sm:$0xff]
    %v1478 = vld [vmem:[%s5 + $0x328] sm:$0xff]
    %v1479 = vld [vmem:[%s5 + $0x330] sm:$0xff]
    %v1480 = vld [vmem:[%s5 + $0x338] sm:$0xff]
    %v1481 = vld [vmem:[%s5 + $0x340] sm:$0xff]
    %v1482 = vld [vmem:[%s5 + $0x348] sm:$0xff]
    %v1483 = vld [vmem:[%s5 + $0x350] sm:$0xff]
    %v1484 = vld [vmem:[%s5 + $0x358] sm:$0xff]
    %v1485 = vld [vmem:[%s5 + $0x360] sm:$0xff]
    %v1486 = vld [vmem:[%s5 + $0x368] sm:$0xff]
    %v1487 = vld [vmem:[%s5 + $0x370] sm:$0xff]
    %v1488 = vld [vmem:[%s5 + $0x378] sm:$0xff]
    %v1489 = vrot.slane %v1241, 4
    %1491 = vmatpush.msra.mxu0 %v1488
    %1492 = vmatpush.msra.mxu0 %v1487
    %1493 = vmatpush.msra.mxu0 %v1486
    %1494 = vmatpush.msra.mxu0 %v1485
    %1495 = vmatpush.msra.mxu0 %v1484
    %1496 = vmatpush.msra.mxu0 %v1483
    %1497 = vmatpush.msra.mxu0 %v1482
    %1498 = vmatpush.msra.mxu0 %v1481
    %1499 = vmatpush.msra.mxu0 %v1480
    %1500 = vmatpush.msra.mxu0 %v1479
    %1501 = vmatpush.msra.mxu0 %v1478
    %1502 = vmatpush.msra.mxu0 %v1477
    %1503 = vmatpush.msra.mxu0 %v1476
    %1504 = vmatpush.msra.mxu0 %v1475
    %1505 = vmatpush.msra.mxu0 %v1474
    %1506 = vmatpush.msra.mxu0 %v1473
    %1507 = vmatmul.f32.gmra.mxu0 %v1489
    %v1508 = vpop.f32.mrf.mxu0
    %v1509 = vadd.f32 0.0, %v1508
    %1510 = vdwg.mxu0
    %v1511 = vadd.f32 %v1472, %v1509
    %v1512 = vld [vmem:[%s5 + $0x380] sm:$0xff]
    %v1513 = vld [vmem:[%s5 + $0x388] sm:$0xff]
    %v1514 = vld [vmem:[%s5 + $0x390] sm:$0xff]
    %v1515 = vld [vmem:[%s5 + $0x398] sm:$0xff]
    %v1516 = vld [vmem:[%s5 + $0x3a0] sm:$0xff]
    %v1517 = vld [vmem:[%s5 + $0x3a8] sm:$0xff]
    %v1518 = vld [vmem:[%s5 + $0x3b0] sm:$0xff]
    %v1519 = vld [vmem:[%s5 + $0x3b8] sm:$0xff]
    %v1520 = vld [vmem:[%s5 + $0x3c0] sm:$0xff]
    %v1521 = vld [vmem:[%s5 + $0x3c8] sm:$0xff]
    %v1522 = vld [vmem:[%s5 + $0x3d0] sm:$0xff]
    %v1523 = vld [vmem:[%s5 + $0x3d8] sm:$0xff]
    %v1524 = vld [vmem:[%s5 + $0x3e0] sm:$0xff]
    %v1525 = vld [vmem:[%s5 + $0x3e8] sm:$0xff]
    %v1526 = vld [vmem:[%s5 + $0x3f0] sm:$0xff]
    %v1527 = vld [vmem:[%s5 + $0x3f8] sm:$0xff]
    %v1528 = vrot.slane %v1241, 6
    %1530 = vmatpush.msra.mxu0 %v1527
    %1531 = vmatpush.msra.mxu0 %v1526
    %1532 = vmatpush.msra.mxu0 %v1525
    %1533 = vmatpush.msra.mxu0 %v1524
    %1534 = vmatpush.msra.mxu0 %v1523
    %1535 = vmatpush.msra.mxu0 %v1522
    %1536 = vmatpush.msra.mxu0 %v1521
    %1537 = vmatpush.msra.mxu0 %v1520
    %1538 = vmatpush.msra.mxu0 %v1519
    %1539 = vmatpush.msra.mxu0 %v1518
    %1540 = vmatpush.msra.mxu0 %v1517
    %1541 = vmatpush.msra.mxu0 %v1516
    %1542 = vmatpush.msra.mxu0 %v1515
    %1543 = vmatpush.msra.mxu0 %v1514
    %1544 = vmatpush.msra.mxu0 %v1513
    %1545 = vmatpush.msra.mxu0 %v1512
    %1546 = vmatmul.f32.gmra.mxu0 %v1528
    %v1547 = vpop.f32.mrf.mxu0
    %v1548 = vadd.f32 0.0, %v1547
    %1549 = vdwg.mxu0
    %v1550 = vadd.f32 %v1511, %v1548
    %v1551 = vld [vmem:[%s5 + $0x400] sm:$0xff]
    %v1552 = vld [vmem:[%s5 + $0x408] sm:$0xff]
    %v1553 = vld [vmem:[%s5 + $0x410] sm:$0xff]
    %v1554 = vld [vmem:[%s5 + $0x418] sm:$0xff]
    %v1555 = vld [vmem:[%s5 + $0x420] sm:$0xff]
    %v1556 = vld [vmem:[%s5 + $0x428] sm:$0xff]
    %v1557 = vld [vmem:[%s5 + $0x430] sm:$0xff]
    %v1558 = vld [vmem:[%s5 + $0x438] sm:$0xff]
    %v1559 = vld [vmem:[%s5 + $0x440] sm:$0xff]
    %v1560 = vld [vmem:[%s5 + $0x448] sm:$0xff]
    %v1561 = vld [vmem:[%s5 + $0x450] sm:$0xff]
    %v1562 = vld [vmem:[%s5 + $0x458] sm:$0xff]
    %v1563 = vld [vmem:[%s5 + $0x460] sm:$0xff]
    %v1564 = vld [vmem:[%s5 + $0x468] sm:$0xff]
    %v1565 = vld [vmem:[%s5 + $0x470] sm:$0xff]
    %v1566 = vld [vmem:[%s5 + $0x478] sm:$0xff]
    %1567 = vmatpush.msra.mxu0 %v1566
    %1568 = vmatpush.msra.mxu0 %v1565
    %1569 = vmatpush.msra.mxu0 %v1564
    %1570 = vmatpush.msra.mxu0 %v1563
    %1571 = vmatpush.msra.mxu0 %v1562
    %1572 = vmatpush.msra.mxu0 %v1561
    %1573 = vmatpush.msra.mxu0 %v1560
    %1574 = vmatpush.msra.mxu0 %v1559
    %1575 = vmatpush.msra.mxu0 %v1558
    %1576 = vmatpush.msra.mxu0 %v1557
    %1577 = vmatpush.msra.mxu0 %v1556
    %1578 = vmatpush.msra.mxu0 %v1555
    %1579 = vmatpush.msra.mxu0 %v1554
    %1580 = vmatpush.msra.mxu0 %v1553
    %1581 = vmatpush.msra.mxu0 %v1552
    %1582 = vmatpush.msra.mxu0 %v1551
    %1583 = vmatmul.f32.gmra.mxu0 %v1242
    %v1584 = vpop.f32.mrf.mxu0
    %v1585 = vadd.f32 0.0, %v1584
    %1586 = vdwg.mxu0
    %v1587 = vadd.f32 %v1550, %v1585
    %v1588 = vld [vmem:[%s6] sm:$0x1]
    %v1589 = vperm.slane %v1588, 0
    %v1590 = vadd.f32 %v1587, %v1589
    %v1591 = vmax.f32 %v1590, 0.0
    %v1592 = vld [vmem:[%s6 + $0x8] sm:$0xff]
    %v1593 = vld [vmem:[%s6 + $0x10] sm:$0xff]
    %v1594 = vld [vmem:[%s6 + $0x18] sm:$0xff]
    %v1595 = vld [vmem:[%s6 + $0x20] sm:$0xff]
    %v1596 = vld [vmem:[%s6 + $0x28] sm:$0xff]
    %v1597 = vld [vmem:[%s6 + $0x30] sm:$0xff]
    %v1598 = vld [vmem:[%s6 + $0x38] sm:$0xff]
    %v1599 = vld [vmem:[%s6 + $0x40] sm:$0xff]
    %v1600 = vld [vmem:[%s6 + $0x48] sm:$0xff]
    %v1601 = vld [vmem:[%s6 + $0x50] sm:$0xff]
    %v1602 = vld [vmem:[%s6 + $0x58] sm:$0xff]
    %v1603 = vld [vmem:[%s6 + $0x60] sm:$0xff]
    %v1604 = vld [vmem:[%s6 + $0x68] sm:$0xff]
    %v1605 = vld [vmem:[%s6 + $0x70] sm:$0xff]
    %v1606 = vld [vmem:[%s6 + $0x78] sm:$0xff]
    %v1607 = vld [vmem:[%s6 + $0x80] sm:$0xff]
    %v1608 = vld [vmem:[%s6 + $0x1] sm:$0x1]
    %v1609 = vperm.slane %v1608, 0
    %1610 = vmatpush.msra.mxu0 %v1607
    %1611 = vmatpush.msra.mxu0 %v1606
    %1612 = vmatpush.msra.mxu0 %v1605
    %1613 = vmatpush.msra.mxu0 %v1604
    %1614 = vmatpush.msra.mxu0 %v1603
    %1615 = vmatpush.msra.mxu0 %v1602
    %1616 = vmatpush.msra.mxu0 %v1601
    %1617 = vmatpush.msra.mxu0 %v1600
    %1618 = vmatpush.msra.mxu0 %v1599
    %1619 = vmatpush.msra.mxu0 %v1598
    %1620 = vmatpush.msra.mxu0 %v1597
    %1621 = vmatpush.msra.mxu0 %v1596
    %1622 = vmatpush.msra.mxu0 %v1595
    %1623 = vmatpush.msra.mxu0 %v1594
    %1624 = vmatpush.msra.mxu0 %v1593
    %1625 = vmatpush.msra.mxu0 %v1592
    %1626 = vmatmul.f32.gmra.mxu0 %v1591
    %v1627 = vpop.f32.mrf.mxu0
    %v1628 = vadd.f32 %v1609, %v1627
    %1629 = vdwg.mxu0
    %v1630 = vsel %vm1037, %v1628, -inf
    %v1631 = vrot.slane %v1630, 4
    %v1632 = vmax.f32 %v1630, %v1631
    %v1633 = vrot.slane %v1632, 2
    %v1634 = vmax.f32 %v1632, %v1633
    %v1635 = vrot.slane %v1634, 1
    %v1636 = vmax.f32 %v1634, %v1635
    %v1637 = vsub.f32 %v1628, %v1636
    %v1638 = vmul.f32 %v1637, 1.442695
    %v1639 = vpow.pop %v1638
    %v1640 = vsel %vm1037, %v1639, 0.0
    %v1641 = vrot.slane %v1640, 4
    %v1642 = vadd.f32 %v1640, %v1641
    %v1643 = vrot.slane %v1642, 2
    %v1644 = vadd.f32 %v1642, %v1643
    %v1645 = vrot.slane %v1644, 1
    %v1646 = vadd.f32 %v1644, %v1645
    %v1647 = vlog2.pop %v1646
    %v1648 = vmul.f32 %v1647, 0.6931472
    %v1649 = vadd.f32 %v1636, %v1648
    %v1650 = vsub.f32 %v1628, %v1649
    %vm1651 = vcmask 74752
    %1652 = vst.msk [vmem:[#allocation2] sm:$0x3] %vm1651, %v1650
    // Predicated region
    $region30: #{forward.1} parent=1 // pred_check
      _
    $region31: #{forward.1} parent=1 // pred_check_branch
      %1654 = sbr.rel (0) target = $region33
    $region32: #{forward.1} parent=1 // pred_region
      %1656 = vsyncadd [#allocation3], 0
      %s1658 = sshll.u32 [#allocation2], 4
      %s1659 = int_to_ptr.vmem [resolvable:$true] %s1658
      %s1660 = sshll.u32 %s7, 4
      %s1661 = int_to_ptr.hbm [resolvable:$true] %s1660
      %1663 = dma.vmem_to_hbm [thread:$0]  %s1659, 32, %s1661, [#allocation3]
    $region33: #{forward.1} parent=1 // pred_fallthru
      _
    // Predicated region
    $region34: #{forward.1} parent=1 // pred_check
      _
    $region35: #{forward.1} parent=1 // pred_check_branch
      %1665 = sbr.rel (0) target = $region37
    $region36: #{forward.1} parent=1 // pred_region
      %1667 = dma.done [#allocation3], 32
    $region37: #{forward.1} parent=1 // pred_fallthru
      _
    %1668 = vsyncpa [#allocation3], 1

</llo_original>
